<compile_context>
chip_gen: v7x
topology: tpu7x:2x2x1
jax: 0.10.0
libtpu: 0.0.40
codegen_flags: <defaults>
</compile_context>

<pallas_src>
import numpy as np
import jax
import jax.numpy as jnp
from jax.experimental import pallas as pl
from jax.experimental.pallas import tpu as pltpu

NODE_TYPE_COL = 0
NODE_TYPE_VAR = 1
NODE_TYPE_CLAUSE = 2

IN_CHANNELS = 16
OUT_CHANNELS = 8
HEADS = 4
HC = HEADS * OUT_CHANNELS            # 32
NEG_SLOPE = 0.2
LN_EPS = 1e-5

MAX_ROW_TILE = 2048                  # rows per grid step (multiple of 8)
MIN_GRID_STEPS = 4                   # let v7x shard the grid over both TCs

_MOSAIC = pltpu.CompilerParams(
    dimension_semantics=("parallel",),
    vmem_limit_bytes=48 * 1024 * 1024,
)


# ----------------------------- small helpers -------------------------------

def _round_up(n, m):
    return ((n + m - 1) // m) * m


def _pick_grid(rows):
    """Row tile (multiple of 8), padded row count and #grid steps.

    Targets >= MIN_GRID_STEPS grid steps so v7x can shard across both
    TensorCores, caps the per-step tile at MAX_ROW_TILE, and keeps the row
    padding waste below ~n_steps*8 rows (no round-up-to-tile blow-up).
    """
    rows8 = _round_up(max(rows, 8), 8)
    n_steps = max(MIN_GRID_STEPS, pl.cdiv(rows8, MAX_ROW_TILE))
    tile = _round_up(pl.cdiv(rows8, n_steps), 8)
    n_steps = pl.cdiv(rows8, tile)
    return tile, tile * n_steps, n_steps


def _pad_rows(a, rows_p):
    pad = rows_p - a.shape[0]
    return a if pad == 0 else jnp.pad(a, ((0, pad), (0, 0)))


def _full_spec(shape):
    nd = len(shape)
    return pl.BlockSpec(shape, lambda i: (0,) * nd)


def _row_spec(tile, feat):
    return pl.BlockSpec((tile, feat), lambda i: (i, 0))


# ----------------------------- Pallas kernels ------------------------------

def _proj_kernel(x_ref, w_ref, b_ref, o_ref):
    # Generic row-tiled linear projection; weights are pre-concatenated in the
    # wrapper so one MXU dot produces a single lane-dense output.
    o_ref[...] = (jnp.dot(x_ref[...], w_ref[...],
                          preferred_element_type=jnp.float32) + b_ref[...])


def _norm_gru_compute(msg_ref, h_ref, gatb_ref, gamma_ref, beta_ref,
                      wi_ref, wh_ref, bi_ref, bh_ref):
    # GAT output bias-add -> LayerNorm -> (Dropout == identity in eval) -> GRUCell.
    # TODO(synk): optional bf16 streaming of row tensors (keep f32 compute) for
    # extra HBM-bandwidth headroom on v6e/v7x.
    m = msg_ref[...] + gatb_ref[...]
    mu = jnp.mean(m, axis=-1, keepdims=True)
    var = jnp.mean((m - mu) ** 2, axis=-1, keepdims=True)
    xn = (m - mu) * jax.lax.rsqrt(var + LN_EPS) * gamma_ref[...] + beta_ref[...]

    h = h_ref[...]
    gi = jnp.dot(xn, wi_ref[...], preferred_element_type=jnp.float32) + bi_ref[...]
    gh = jnp.dot(h, wh_ref[...], preferred_element_type=jnp.float32) + bh_ref[...]
    d = OUT_CHANNELS
    r = jax.nn.sigmoid(gi[:, :d] + gh[:, :d])
    z = jax.nn.sigmoid(gi[:, d:2 * d] + gh[:, d:2 * d])
    n = jnp.tanh(gi[:, 2 * d:] + r * gh[:, 2 * d:])
    return (1.0 - z) * n + z * h


def _norm_gru_kernel(msg_ref, h_ref, gatb_ref, gamma_ref, beta_ref,
                     wi_ref, wh_ref, bi_ref, bh_ref, o_ref):
    # TODO(synk): pack this 8-lane output into a [rows/16, 128] slab for v5e's
    # single vector-store slot; left unpacked to avoid an in-kernel relayout.
    o_ref[...] = _norm_gru_compute(msg_ref, h_ref, gatb_ref, gamma_ref,
                                   beta_ref, wi_ref, wh_ref, bi_ref, bh_ref)


def _norm_gru_proj_kernel(msg_ref, h_ref, gatb_ref, gamma_ref, beta_ref,
                          wi_ref, wh_ref, bi_ref, bh_ref, wl_ref, bl_ref,
                          o_ref):
    # Fused: GRU update + next-phase GATv2 source projection of h_new.
    # Single lane-dense 40-lane output: [h_new | h_new @ W_l + b_l].
    h_new = _norm_gru_compute(msg_ref, h_ref, gatb_ref, gamma_ref, beta_ref,
                              wi_ref, wh_ref, bi_ref, bh_ref)
    xl = jnp.dot(h_new, wl_ref[...], preferred_element_type=jnp.float32) + bl_ref[...]
    o_ref[...] = jnp.concatenate([h_new, xl], axis=-1)


# ----------------------------- kernel wrappers ------------------------------

def projection(x, w, b):
    """x @ w + b, row-tiled over the node dimension."""
    rows, k = x.shape
    n = w.shape[1]
    tile, rows_p, steps = _pick_grid(rows)
    out = pl.pallas_call(
        _proj_kernel,
        grid=(steps,),
        in_specs=[_row_spec(tile, k), _full_spec((k, n)), _full_spec((1, n))],
        out_specs=_row_spec(tile, n),
        out_shape=jax.ShapeDtypeStruct((rows_p, n), jnp.float32),
        compiler_params=_MOSAIC,
    )(_pad_rows(x, rows_p), w, b.reshape(1, n))
    return out[:rows]


def norm_gru(msg, h_old, gat_bias, ln_p, gru_p, next_proj=None):
    """h_new = GRUCell(LayerNorm(msg + gat_bias), h_old) in one pallas_call.

    If next_proj=(W_l, b_l) is given, also emits h_new @ W_l + b_l fused in the
    same kernel as a single [rows, OUT_CHANNELS + HC] lane-dense output.
    """
    rows = msg.shape[0]
    tile, rows_p, steps = _pick_grid(rows)
    d3 = 3 * OUT_CHANNELS

    in_specs = [
        _row_spec(tile, HC), _row_spec(tile, OUT_CHANNELS),
        _full_spec((1, HC)), _full_spec((1, HC)), _full_spec((1, HC)),
        _full_spec((HC, d3)), _full_spec((OUT_CHANNELS, d3)),
        _full_spec((1, d3)), _full_spec((1, d3)),
    ]
    args = [
        _pad_rows(msg, rows_p), _pad_rows(h_old, rows_p),
        gat_bias.reshape(1, HC),
        ln_p["gamma"].reshape(1, HC), ln_p["beta"].reshape(1, HC),
        gru_p["w_i"], gru_p["w_h"],
        gru_p["b_i"].reshape(1, d3), gru_p["b_h"].reshape(1, d3),
    ]
    if next_proj is None:
        kernel, out_w = _norm_gru_kernel, OUT_CHANNELS
    else:
        w_l, b_l = next_proj
        kernel, out_w = _norm_gru_proj_kernel, OUT_CHANNELS + HC
        in_specs += [_full_spec((OUT_CHANNELS, HC)), _full_spec((1, HC))]
        args += [w_l, b_l.reshape(1, HC)]

    out = pl.pallas_call(
        kernel,
        grid=(steps,),
        in_specs=in_specs,
        out_specs=_row_spec(tile, out_w),
        out_shape=jax.ShapeDtypeStruct((rows_p, out_w), jnp.float32),
        compiler_params=_MOSAIC,
    )(*args)
    return out[:rows]


# ----------------------------- GATv2 edge glue ------------------------------

def gat_aggregate(xl, xr, src, dst, att, num_dst):
    """Edge scoring + segment softmax + weighted scatter-add (XLA under jit).

    Edges are dst-sorted at preprocess time so segment reductions run over
    contiguous segments (indices_are_sorted=True).
    """
    # TODO(synk): full Pallas fix — PrefetchScalarGridSpec kernel over
    # dst-sorted edge tiles with CSR offsets in SMEM, fusing gather + LeakyReLU
    # + score + online softmax + weighted accumulate in one pass.
    xl_e = jnp.take(xl, src, axis=0)                               # [E, H*C]
    xr_e = jnp.take(xr, dst, axis=0, indices_are_sorted=True)      # [E, H*C]
    z = xl_e + xr_e
    z = jnp.where(z > 0, z, NEG_SLOPE * z)                         # LeakyReLU
    s = jnp.sum(z.reshape(-1, HEADS, OUT_CHANNELS) * att[None], axis=-1)  # [E,H]

    smax = jax.ops.segment_max(s, dst, num_segments=num_dst,
                               indices_are_sorted=True)
    ex = jnp.exp(s - jnp.take(smax, dst, axis=0, indices_are_sorted=True))
    denom = jax.ops.segment_sum(ex, dst, num_segments=num_dst,
                                indices_are_sorted=True)
    alpha = ex / (jnp.take(denom, dst, axis=0, indices_are_sorted=True) + 1e-16)
    # TODO(synk): attention dropout omitted (eval-mode forward, identity).

    msg = xl_e.reshape(-1, HEADS, OUT_CHANNELS) * alpha[:, :, None]
    out = jax.ops.segment_sum(msg, dst, num_segments=num_dst,
                              indices_are_sorted=True)
    return out.reshape(num_dst, HC)


# ----------------------------- graph preprocessing --------------------------

def preprocess_graph(x_host, edge_index):
    """Host-side, once per graph structure; keeps the jitted forward sync-free."""
    node_types = np.asarray(x_host)[:, NODE_TYPE_COL].astype(np.int64)
    n_nodes = node_types.shape[0]
    var_idx = np.nonzero(node_types == NODE_TYPE_VAR)[0]
    clause_idx = np.nonzero(node_types == NODE_TYPE_CLAUSE)[0]
    num_vars, num_clauses = len(var_idx), len(clause_idx)

    var_map = np.full((n_nodes,), -1, dtype=np.int64)
    clause_map = np.full((n_nodes,), -1, dtype=np.int64)
    var_map[var_idx] = np.arange(num_vars)
    clause_map[clause_idx] = np.arange(num_clauses)

    ei = np.asarray(edge_index)
    src_t, dst_t = node_types[ei[0]], node_types[ei[1]]
    v2c = ei[:, (src_t == NODE_TYPE_VAR) & (dst_t == NODE_TYPE_CLAUSE)]
    c2v = ei[:, (src_t == NODE_TYPE_CLAUSE) & (dst_t == NODE_TYPE_VAR)]

    def _remap_sorted(edges, src_map, dst_map):
        s, d = src_map[edges[0]], dst_map[edges[1]]
        order = np.argsort(d, kind="stable")   # dst-sorted -> contiguous segments
        return s[order], d[order]

    v2c_src, v2c_dst = _remap_sorted(v2c, var_map, clause_map)
    c2v_src, c2v_dst = _remap_sorted(c2v, clause_map, var_map)

    # Inverse permutation: final reassembly becomes one gather (no scatters).
    gather_idx = np.full((n_nodes,), num_vars + num_clauses, dtype=np.int64)
    gather_idx[var_idx] = np.arange(num_vars)
    gather_idx[clause_idx] = num_vars + np.arange(num_clauses)

    as_i32 = lambda a: jnp.asarray(a, jnp.int32)
    return dict(
        var_idx=as_i32(var_idx), clause_idx=as_i32(clause_idx),
        v2c_src=as_i32(v2c_src), v2c_dst=as_i32(v2c_dst),
        c2v_src=as_i32(c2v_src), c2v_dst=as_i32(c2v_dst),
        gather_idx=as_i32(gather_idx),
    )


# ----------------------------- module forward ------------------------------

@jax.jit
def sat_message_passing(x, params, graph):
    x = x.astype(jnp.float32)
    var_idx, clause_idx = graph["var_idx"], graph["clause_idx"]
    num_vars, num_clauses = var_idx.shape[0], clause_idx.shape[0]

    x_vars = jnp.take(x, var_idx, axis=0, unique_indices=True)
    x_clauses = jnp.take(x, clause_idx, axis=0, unique_indices=True)
    # Contract from the original module: the last OUT_CHANNELS input columns
    # carry the previous hidden state.
    h_old = x[:, -OUT_CHANNELS:]
    h_v_old = jnp.take(h_old, var_idx, axis=0, unique_indices=True)
    h_c_old = jnp.take(h_old, clause_idx, axis=0, unique_indices=True)

    # ---- V2C phase --------------------------------------------------------
    # vars: [x_vars @ W_l(v2c) | x_vars @ W_r(c2v)] fused -> 64-lane output
    w_var = jnp.concatenate([params["v2c"]["w_l"], params["c2v"]["w_r"]], axis=1)
    b_var = jnp.concatenate([params["v2c"]["b_l"], params["c2v"]["b_r"]], axis=0)
    var_proj = projection(x_vars, w_var, b_var)
    xl_v2c, xr_c2v = var_proj[:, :HC], var_proj[:, HC:]
    # clauses: destination projection for V2C
    xr_v2c = projection(x_clauses, params["v2c"]["w_r"], params["v2c"]["b_r"])

    m_c = gat_aggregate(xl_v2c, xr_v2c, graph["v2c_src"], graph["v2c_dst"],
                        params["v2c"]["att"], num_clauses)

    # clause update + fused C2V source projection of h_c_new (40-lane output)
    hc_out = norm_gru(m_c, h_c_old, params["v2c"]["bias"],
                      params["c_norm"], params["c_update"],
                      next_proj=(params["c2v"]["w_l"], params["c2v"]["b_l"]))
    h_c_new, xl_c2v = hc_out[:, :OUT_CHANNELS], hc_out[:, OUT_CHANNELS:]

    # ---- C2V phase --------------------------------------------------------
    m_v = gat_aggregate(xl_c2v, xr_c2v, graph["c2v_src"], graph["c2v_dst"],
                        params["c2v"]["att"], num_vars)
    h_v_new = norm_gru(m_v, h_v_old, params["c2v"]["bias"],
                       params["v_norm"], params["v_update"])

    # ---- reassembly via one gather ----------------------------------------
    combined = jnp.concatenate(
        [h_v_new, h_c_new, jnp.zeros((1, OUT_CHANNELS), h_v_new.dtype)], axis=0)
    return jnp.take(combined, graph["gather_idx"], axis=0)


# ----------------------------- pure-JAX reference ---------------------------

def _ln_ref(m, p):
    mu = jnp.mean(m, -1, keepdims=True)
    var = jnp.mean((m - mu) ** 2, -1, keepdims=True)
    return (m - mu) * jax.lax.rsqrt(var + LN_EPS) * p["gamma"] + p["beta"]


def _gru_ref(xn, h, p):
    gi = xn @ p["w_i"] + p["b_i"]
    gh = h @ p["w_h"] + p["b_h"]
    d = OUT_CHANNELS
    r = jax.nn.sigmoid(gi[:, :d] + gh[:, :d])
    z = jax.nn.sigmoid(gi[:, d:2 * d] + gh[:, d:2 * d])
    n = jnp.tanh(gi[:, 2 * d:] + r * gh[:, 2 * d:])
    return (1.0 - z) * n + z * h


def reference_forward(x, params, graph):
    x = x.astype(jnp.float32)
    var_idx, clause_idx = graph["var_idx"], graph["clause_idx"]
    x_vars = jnp.take(x, var_idx, axis=0)
    x_clauses = jnp.take(x, clause_idx, axis=0)
    h_old = x[:, -OUT_CHANNELS:]
    h_v_old = jnp.take(h_old, var_idx, axis=0)
    h_c_old = jnp.take(h_old, clause_idx, axis=0)

    p = params["v2c"]
    xl = x_vars @ p["w_l"] + p["b_l"]
    xr = x_clauses @ p["w_r"] + p["b_r"]
    m_c = gat_aggregate(xl, xr, graph["v2c_src"], graph["v2c_dst"], p["att"],
                        clause_idx.shape[0])
    h_c_new = _gru_ref(_ln_ref(m_c + p["bias"], params["c_norm"]),
                       h_c_old, params["c_update"])

    p = params["c2v"]
    xl2 = h_c_new @ p["w_l"] + p["b_l"]
    xr2 = x_vars @ p["w_r"] + p["b_r"]
    m_v = gat_aggregate(xl2, xr2, graph["c2v_src"], graph["c2v_dst"], p["att"],
                        var_idx.shape[0])
    h_v_new = _gru_ref(_ln_ref(m_v + p["bias"], params["v_norm"]),
                       h_v_old, params["v_update"])

    combined = jnp.concatenate(
        [h_v_new, h_c_new, jnp.zeros((1, OUT_CHANNELS), jnp.float32)], axis=0)
    return jnp.take(combined, graph["gather_idx"], axis=0)


# ----------------------------- params / main -------------------------------

def init_params(key):
    keys = iter(jax.random.split(key, 64))

    def nrm(shape, scale=0.1):
        return scale * jax.random.normal(next(keys), shape, dtype=jnp.float32)

    def gat_params(din_src, din_dst):
        return dict(
            w_l=nrm((din_src, HC)), b_l=nrm((HC,)),
            w_r=nrm((din_dst, HC)), b_r=nrm((HC,)),
            att=nrm((HEADS, OUT_CHANNELS)),
            bias=nrm((HC,)),
        )

    def gru_params(din, dh):
        # gates concatenated r|z|n to match torch.nn.GRUCell chunk order
        return dict(
            w_i=nrm((din, 3 * dh)), w_h=nrm((dh, 3 * dh)),
            b_i=nrm((3 * dh,)), b_h=nrm((3 * dh,)),
        )

    ln = lambda: dict(gamma=jnp.ones((HC,), jnp.float32),
                      beta=jnp.zeros((HC,), jnp.float32))

    return dict(
        v2c=gat_params(IN_CHANNELS, IN_CHANNELS),
        c_norm=ln(),
        c_update=gru_params(HC, OUT_CHANNELS),
        c2v=gat_params(OUT_CHANNELS, IN_CHANNELS),
        v_norm=ln(),
        v_update=gru_params(HC, OUT_CHANNELS),
    )


if __name__ == "__main__":
    key = jax.random.PRNGKey(0)
    k_x, k_p = jax.random.split(key)

    # 6 variable nodes, 4 clause nodes, 1 "other" node (type 0)
    node_types = np.array([1, 1, 1, 1, 1, 1, 2, 2, 2, 2, 0], dtype=np.float32)
    n_nodes = node_types.shape[0]

    x = jax.random.normal(k_x, (n_nodes, IN_CHANNELS), dtype=jnp.float32)
    x = x.at[:, NODE_TYPE_COL].set(jnp.asarray(node_types))

    # bidirectional var<->clause edges
    pairs = [(0, 6), (1, 6), (2, 6), (1, 7), (3, 7),
             (2, 8), (4, 8), (5, 8), (0, 9), (5, 9)]
    src = [v for v, c in pairs] + [c for v, c in pairs]
    dst = [c for v, c in pairs] + [v for v, c in pairs]
    edge_index = np.stack([np.array(src, np.int64), np.array(dst, np.int64)])

    params = init_params(k_p)
    graph = preprocess_graph(np.asarray(x), edge_index)   # host-side, once per graph

    out = jax.block_until_ready(sat_message_passing(x, params, graph))
    assert out.shape == (n_nodes, OUT_CHANNELS)
    assert bool(jnp.all(jnp.isfinite(out)))

    ref = jax.block_until_ready(reference_forward(x, params, graph))
    assert bool(jnp.allclose(out, ref, rtol=1e-4, atol=1e-4)), (
        "max abs diff vs reference: %g" % float(jnp.max(jnp.abs(out - ref))))

    print("KERNEL_OK")
</pallas_src>

<mosaic_0001>
module attributes {stable_mosaic.version = 11 : i64} {
  func.func @_proj_kernel(%arg0: i32, %arg1: memref<8x16xf32, #tpu.memory_space<vmem>>, %arg2: memref<16x64xf32, #tpu.memory_space<vmem>>, %arg3: memref<1x64xf32, #tpu.memory_space<vmem>>, %arg4: memref<8x64xf32, #tpu.memory_space<vmem>>) attributes {dimension_semantics = [#tpu.dimension_semantics<parallel>], iteration_bounds = array<i64: 1>, scalar_prefetch = 0 : i64, scratch_operands = 0 : i64, tpu.core_type = #tpu.core_type<tc>, window_params = [{transform_indices = @transform_0, window_bounds = array<i64: 8, 16>}, {pipeline_mode = #tpu.pipeline_mode<synchronous>, transform_indices = @transform_1, window_bounds = array<i64: 16, 64>}, {pipeline_mode = #tpu.pipeline_mode<synchronous>, transform_indices = @transform_2, window_bounds = array<i64: 1, 64>}, {transform_indices = @transform_3, window_bounds = array<i64: 8, 64>}]} {
    %c0 = arith.constant 0 : index
    %c0_0 = arith.constant 0 : index
    %0 = vector.load %arg1[%c0, %c0_0] : memref<8x16xf32, #tpu.memory_space<vmem>>, vector<8x16xf32>
    %c0_1 = arith.constant 0 : index
    %c0_2 = arith.constant 0 : index
    %1 = vector.load %arg2[%c0_1, %c0_2] : memref<16x64xf32, #tpu.memory_space<vmem>>, vector<16x64xf32>
    %cst = arith.constant dense<0.000000e+00> : vector<8x64xf32>
    %2 = tpu.matmul %0, %1, %cst {dimension_numbers = #tpu.dot_dimension_numbers<[1], [0], [0], [1], [0, 0, 1, 1], [], []>} : vector<8x16xf32>, vector<16x64xf32>, vector<8x64xf32> -> vector<8x64xf32>
    %c0_3 = arith.constant 0 : index
    %c0_4 = arith.constant 0 : index
    %3 = vector.load %arg3[%c0_3, %c0_4] : memref<1x64xf32, #tpu.memory_space<vmem>>, vector<1x64xf32>
    %4 = vector.broadcast %3 : vector<1x64xf32> to vector<8x64xf32>
    %5 = arith.addf %2, %4 : vector<8x64xf32>
    %c0_5 = arith.constant 0 : index
    %c0_6 = arith.constant 0 : index
    %6 = vector.load %arg4[%c0_5, %c0_6] : memref<8x64xf32, #tpu.memory_space<vmem>>, vector<8x64xf32>
    tpu.vector_store %arg4[%c0_5, %c0_6], %5 {strides = array<i32>} : memref<8x64xf32, #tpu.memory_space<vmem>>, vector<8x64xf32>,
    return
  }
  func.func @transform_0(%arg0: i32) -> (i32, i32) {
    %c0_i32 = arith.constant 0 : i32
    %c0_i32_0 = arith.constant 0 : i32
    return %arg0, %c0_i32 : i32, i32
  }
  func.func @transform_1(%arg0: i32) -> (i32, i32) {
    %c0_i32 = arith.constant 0 : i32
    %c0_i32_0 = arith.constant 0 : i32
    %c0_i32_1 = arith.constant 0 : i32
    return %c0_i32, %c0_i32_0 : i32, i32
  }
  func.func @transform_2(%arg0: i32) -> (i32, i32) {
    %c0_i32 = arith.constant 0 : i32
    %c0_i32_0 = arith.constant 0 : i32
    %c0_i32_1 = arith.constant 0 : i32
    return %c0_i32, %c0_i32_0 : i32, i32
  }
  func.func @transform_3(%arg0: i32) -> (i32, i32) {
    %c0_i32 = arith.constant 0 : i32
    %c0_i32_0 = arith.constant 0 : i32
    return %arg0, %c0_i32 : i32, i32
  }
}

module attributes {stable_mosaic.version = 11 : i64} {
  func.func @_proj_kernel(%arg0: i32, %arg1: memref<8x16xf32, #tpu.memory_space<vmem>>, %arg2: memref<16x32xf32, #tpu.memory_space<vmem>>, %arg3: memref<1x32xf32, #tpu.memory_space<vmem>>, %arg4: memref<8x32xf32, #tpu.memory_space<vmem>>) attributes {dimension_semantics = [#tpu.dimension_semantics<parallel>], iteration_bounds = array<i64: 1>, scalar_prefetch = 0 : i64, scratch_operands = 0 : i64, tpu.core_type = #tpu.core_type<tc>, window_params = [{transform_indices = @transform_0, window_bounds = array<i64: 8, 16>}, {pipeline_mode = #tpu.pipeline_mode<synchronous>, transform_indices = @transform_1, window_bounds = array<i64: 16, 32>}, {pipeline_mode = #tpu.pipeline_mode<synchronous>, transform_indices = @transform_2, window_bounds = array<i64: 1, 32>}, {transform_indices = @transform_3, window_bounds = array<i64: 8, 32>}]} {
    %c0 = arith.constant 0 : index
    %c0_0 = arith.constant 0 : index
    %0 = vector.load %arg1[%c0, %c0_0] : memref<8x16xf32, #tpu.memory_space<vmem>>, vector<8x16xf32>
    %c0_1 = arith.constant 0 : index
    %c0_2 = arith.constant 0 : index
    %1 = vector.load %arg2[%c0_1, %c0_2] : memref<16x32xf32, #tpu.memory_space<vmem>>, vector<16x32xf32>
    %cst = arith.constant dense<0.000000e+00> : vector<8x32xf32>
    %2 = tpu.matmul %0, %1, %cst {dimension_numbers = #tpu.dot_dimension_numbers<[1], [0], [0], [1], [0, 0, 1, 1], [], []>} : vector<8x16xf32>, vector<16x32xf32>, vector<8x32xf32> -> vector<8x32xf32>
    %c0_3 = arith.constant 0 : index
    %c0_4 = arith.constant 0 : index
    %3 = vector.load %arg3[%c0_3, %c0_4] : memref<1x32xf32, #tpu.memory_space<vmem>>, vector<1x32xf32>
    %4 = vector.broadcast %3 : vector<1x32xf32> to vector<8x32xf32>
    %5 = arith.addf %2, %4 : vector<8x32xf32>
    %c0_5 = arith.constant 0 : index
    %c0_6 = arith.constant 0 : index
    %6 = vector.load %arg4[%c0_5, %c0_6] : memref<8x32xf32, #tpu.memory_space<vmem>>, vector<8x32xf32>
    tpu.vector_store %arg4[%c0_5, %c0_6], %5 {strides = array<i32>} : memref<8x32xf32, #tpu.memory_space<vmem>>, vector<8x32xf32>,
    return
  }
  func.func @transform_0(%arg0: i32) -> (i32, i32) {
    %c0_i32 = arith.constant 0 : i32
    %c0_i32_0 = arith.constant 0 : i32
    return %arg0, %c0_i32 : i32, i32
  }
  func.func @transform_1(%arg0: i32) -> (i32, i32) {
    %c0_i32 = arith.constant 0 : i32
    %c0_i32_0 = arith.constant 0 : i32
    %c0_i32_1 = arith.constant 0 : i32
    return %c0_i32, %c0_i32_0 : i32, i32
  }
  func.func @transform_2(%arg0: i32) -> (i32, i32) {
    %c0_i32 = arith.constant 0 : i32
    %c0_i32_0 = arith.constant 0 : i32
    %c0_i32_1 = arith.constant 0 : i32
    return %c0_i32, %c0_i32_0 : i32, i32
  }
  func.func @transform_3(%arg0: i32) -> (i32, i32) {
    %c0_i32 = arith.constant 0 : i32
    %c0_i32_0 = arith.constant 0 : i32
    return %arg0, %c0_i32 : i32, i32
  }
}

module attributes {stable_mosaic.version = 11 : i64} {
  func.func @_norm_gru_proj_kernel(%arg0: i32, %arg1: memref<8x32xf32, #tpu.memory_space<vmem>>, %arg2: memref<8x8xf32, #tpu.memory_space<vmem>>, %arg3: memref<1x32xf32, #tpu.memory_space<vmem>>, %arg4: memref<1x32xf32, #tpu.memory_space<vmem>>, %arg5: memref<1x32xf32, #tpu.memory_space<vmem>>, %arg6: memref<32x24xf32, #tpu.memory_space<vmem>>, %arg7: memref<8x24xf32, #tpu.memory_space<vmem>>, %arg8: memref<1x24xf32, #tpu.memory_space<vmem>>, %arg9: memref<1x24xf32, #tpu.memory_space<vmem>>, %arg10: memref<8x32xf32, #tpu.memory_space<vmem>>, %arg11: memref<1x32xf32, #tpu.memory_space<vmem>>, %arg12: memref<8x40xf32, #tpu.memory_space<vmem>>) attributes {dimension_semantics = [#tpu.dimension_semantics<parallel>], iteration_bounds = array<i64: 1>, scalar_prefetch = 0 : i64, scratch_operands = 0 : i64, tpu.core_type = #tpu.core_type<tc>, window_params = [{transform_indices = @transform_0, window_bounds = array<i64: 8, 32>}, {transform_indices = @transform_1, window_bounds = array<i64: 8, 8>}, {pipeline_mode = #tpu.pipeline_mode<synchronous>, transform_indices = @transform_2, window_bounds = array<i64: 1, 32>}, {pipeline_mode = #tpu.pipeline_mode<synchronous>, transform_indices = @transform_3, window_bounds = array<i64: 1, 32>}, {pipeline_mode = #tpu.pipeline_mode<synchronous>, transform_indices = @transform_4, window_bounds = array<i64: 1, 32>}, {pipeline_mode = #tpu.pipeline_mode<synchronous>, transform_indices = @transform_5, window_bounds = array<i64: 32, 24>}, {pipeline_mode = #tpu.pipeline_mode<synchronous>, transform_indices = @transform_6, window_bounds = array<i64: 8, 24>}, {pipeline_mode = #tpu.pipeline_mode<synchronous>, transform_indices = @transform_7, window_bounds = array<i64: 1, 24>}, {pipeline_mode = #tpu.pipeline_mode<synchronous>, transform_indices = @transform_8, window_bounds = array<i64: 1, 24>}, {pipeline_mode = #tpu.pipeline_mode<synchronous>, transform_indices = @transform_9, window_bounds = array<i64: 8, 32>}, {pipeline_mode = #tpu.pipeline_mode<synchronous>, transform_indices = @transform_10, window_bounds = array<i64: 1, 32>}, {transform_indices = @transform_11, window_bounds = array<i64: 8, 40>}]} {
    %c0 = arith.constant 0 : index
    %c0_0 = arith.constant 0 : index
    %0 = vector.load %arg1[%c0, %c0_0] : memref<8x32xf32, #tpu.memory_space<vmem>>, vector<8x32xf32>
    %c0_1 = arith.constant 0 : index
    %c0_2 = arith.constant 0 : index
    %1 = vector.load %arg3[%c0_1, %c0_2] : memref<1x32xf32, #tpu.memory_space<vmem>>, vector<1x32xf32>
    %2 = vector.broadcast %1 : vector<1x32xf32> to vector<8x32xf32>
    %3 = arith.addf %0, %2 : vector<8x32xf32>
    %cst = arith.constant dense<0.000000e+00> : vector<8xf32>
    %4 = vector.multi_reduction <add>, %3, %cst [1] : vector<8x32xf32> to vector<8xf32>
    %5 = vector.shape_cast %4 : vector<8xf32> to vector<8x1xf32>
    %cst_3 = arith.constant 3.200000e+01 : f32
    %6 = vector.broadcast %cst_3 : f32 to vector<8x1xf32>
    %7 = arith.divf %5, %6 : vector<8x1xf32>
    %8 = vector.broadcast %7 : vector<8x1xf32> to vector<8x32xf32>
    %9 = arith.subf %3, %8 : vector<8x32xf32>
    %10 = arith.mulf %9, %9 : vector<8x32xf32>
    %cst_4 = arith.constant dense<0.000000e+00> : vector<8xf32>
    %11 = vector.multi_reduction <add>, %10, %cst_4 [1] : vector<8x32xf32> to vector<8xf32>
    %12 = vector.shape_cast %11 : vector<8xf32> to vector<8x1xf32>
    %cst_5 = arith.constant 3.200000e+01 : f32
    %13 = vector.broadcast %cst_5 : f32 to vector<8x1xf32>
    %14 = arith.divf %12, %13 : vector<8x1xf32>
    %15 = vector.broadcast %7 : vector<8x1xf32> to vector<8x32xf32>
    %16 = arith.subf %3, %15 : vector<8x32xf32>
    %cst_6 = arith.constant 9.99999974E-6 : f32
    %17 = vector.broadcast %cst_6 : f32 to vector<8x1xf32>
    %18 = arith.addf %14, %17 : vector<8x1xf32>
    %19 = math.rsqrt %18 : vector<8x1xf32>
    %20 = vector.broadcast %19 : vector<8x1xf32> to vector<8x32xf32>
    %21 = arith.mulf %16, %20 : vector<8x32xf32>
    %c0_7 = arith.constant 0 : index
    %c0_8 = arith.constant 0 : index
    %22 = vector.load %arg4[%c0_7, %c0_8] : memref<1x32xf32, #tpu.memory_space<vmem>>, vector<1x32xf32>
    %23 = vector.broadcast %22 : vector<1x32xf32> to vector<8x32xf32>
    %24 = arith.mulf %21, %23 : vector<8x32xf32>
    %c0_9 = arith.constant 0 : index
    %c0_10 = arith.constant 0 : index
    %25 = vector.load %arg5[%c0_9, %c0_10] : memref<1x32xf32, #tpu.memory_space<vmem>>, vector<1x32xf32>
    %26 = vector.broadcast %25 : vector<1x32xf32> to vector<8x32xf32>
    %27 = arith.addf %24, %26 : vector<8x32xf32>
    %c0_11 = arith.constant 0 : index
    %c0_12 = arith.constant 0 : index
    %28 = vector.load %arg2[%c0_11, %c0_12] : memref<8x8xf32, #tpu.memory_space<vmem>>, vector<8x8xf32>
    %c0_13 = arith.constant 0 : index
    %c0_14 = arith.constant 0 : index
    %29 = vector.load %arg6[%c0_13, %c0_14] : memref<32x24xf32, #tpu.memory_space<vmem>>, vector<32x24xf32>
    %cst_15 = arith.constant dense<0.000000e+00> : vector<8x24xf32>
    %30 = tpu.matmul %27, %29, %cst_15 {dimension_numbers = #tpu.dot_dimension_numbers<[1], [0], [0], [1], [0, 0, 1, 1], [], []>} : vector<8x32xf32>, vector<32x24xf32>, vector<8x24xf32> -> vector<8x24xf32>
    %c0_16 = arith.constant 0 : index
    %c0_17 = arith.constant 0 : index
    %31 = vector.load %arg8[%c0_16, %c0_17] : memref<1x24xf32, #tpu.memory_space<vmem>>, vector<1x24xf32>
    %32 = vector.broadcast %31 : vector<1x24xf32> to vector<8x24xf32>
    %33 = arith.addf %30, %32 : vector<8x24xf32>
    %c0_18 = arith.constant 0 : index
    %c0_19 = arith.constant 0 : index
    %34 = vector.load %arg7[%c0_18, %c0_19] : memref<8x24xf32, #tpu.memory_space<vmem>>, vector<8x24xf32>
    %cst_20 = arith.constant dense<0.000000e+00> : vector<8x24xf32>
    %35 = tpu.matmul %28, %34, %cst_20 {dimension_numbers = #tpu.dot_dimension_numbers<[1], [0], [0], [1], [0, 0, 1, 1], [], []>} : vector<8x8xf32>, vector<8x24xf32>, vector<8x24xf32> -> vector<8x24xf32>
    %c0_21 = arith.constant 0 : index
    %c0_22 = arith.constant 0 : index
    %36 = vector.load %arg9[%c0_21, %c0_22] : memref<1x24xf32, #tpu.memory_space<vmem>>, vector<1x24xf32>
    %37 = vector.broadcast %36 : vector<1x24xf32> to vector<8x24xf32>
    %38 = arith.addf %35, %37 : vector<8x24xf32>
    %39 = vector.extract_strided_slice %33 {offsets = [0, 0], sizes = [8, 8], strides = [1, 1]} : vector<8x24xf32> to vector<8x8xf32>
    %40 = vector.extract_strided_slice %38 {offsets = [0, 0], sizes = [8, 8], strides = [1, 1]} : vector<8x24xf32> to vector<8x8xf32>
    %41 = arith.addf %39, %40 : vector<8x8xf32>
    %42 = arith.negf %41 : vector<8x8xf32>
    %43 = math.exp %42 : vector<8x8xf32>
    %cst_23 = arith.constant 1.000000e+00 : f32
    %44 = vector.broadcast %cst_23 : f32 to vector<8x8xf32>
    %45 = arith.addf %44, %43 : vector<8x8xf32>
    %46 = arith.divf %44, %45 : vector<8x8xf32>
    %47 = vector.extract_strided_slice %33 {offsets = [0, 8], sizes = [8, 8], strides = [1, 1]} : vector<8x24xf32> to vector<8x8xf32>
    %48 = vector.extract_strided_slice %38 {offsets = [0, 8], sizes = [8, 8], strides = [1, 1]} : vector<8x24xf32> to vector<8x8xf32>
    %49 = arith.addf %47, %48 : vector<8x8xf32>
    %50 = arith.negf %49 : vector<8x8xf32>
    %51 = math.exp %50 : vector<8x8xf32>
    %cst_24 = arith.constant 1.000000e+00 : f32
    %52 = vector.broadcast %cst_24 : f32 to vector<8x8xf32>
    %53 = arith.addf %52, %51 : vector<8x8xf32>
    %54 = arith.divf %52, %53 : vector<8x8xf32>
    %55 = vector.extract_strided_slice %33 {offsets = [0, 16], sizes = [8, 8], strides = [1, 1]} : vector<8x24xf32> to vector<8x8xf32>
    %56 = vector.extract_strided_slice %38 {offsets = [0, 16], sizes = [8, 8], strides = [1, 1]} : vector<8x24xf32> to vector<8x8xf32>
    %57 = arith.mulf %46, %56 : vector<8x8xf32>
    %58 = arith.addf %55, %57 : vector<8x8xf32>
    %59 = math.tanh %58 : vector<8x8xf32>
    %cst_25 = arith.constant 1.000000e+00 : f32
    %60 = vector.broadcast %cst_25 : f32 to vector<8x8xf32>
    %61 = arith.subf %60, %54 : vector<8x8xf32>
    %62 = arith.mulf %61, %59 : vector<8x8xf32>
    %63 = arith.mulf %54, %28 : vector<8x8xf32>
    %64 = arith.addf %62, %63 : vector<8x8xf32>
    %c0_26 = arith.constant 0 : index
    %c0_27 = arith.constant 0 : index
    %65 = vector.load %arg10[%c0_26, %c0_27] : memref<8x32xf32, #tpu.memory_space<vmem>>, vector<8x32xf32>
    %cst_28 = arith.constant dense<0.000000e+00> : vector<8x32xf32>
    %66 = tpu.matmul %64, %65, %cst_28 {dimension_numbers = #tpu.dot_dimension_numbers<[1], [0], [0], [1], [0, 0, 1, 1], [], []>} : vector<8x8xf32>, vector<8x32xf32>, vector<8x32xf32> -> vector<8x32xf32>
    %c0_29 = arith.constant 0 : index
    %c0_30 = arith.constant 0 : index
    %67 = vector.load %arg11[%c0_29, %c0_30] : memref<1x32xf32, #tpu.memory_space<vmem>>, vector<1x32xf32>
    %68 = vector.broadcast %67 : vector<1x32xf32> to vector<8x32xf32>
    %69 = arith.addf %66, %68 : vector<8x32xf32>
    %70 = tpu.concatenate %64, %69 in 1 : vector<8x8xf32>, vector<8x32xf32> -> vector<8x40xf32>
    %c0_31 = arith.constant 0 : index
    %c0_32 = arith.constant 0 : index
    %71 = vector.load %arg12[%c0_31, %c0_32] : memref<8x40xf32, #tpu.memory_space<vmem>>, vector<8x40xf32>
    tpu.vector_store %arg12[%c0_31, %c0_32], %70 {strides = array<i32>} : memref<8x40xf32, #tpu.memory_space<vmem>>, vector<8x40xf32>,
    return
  }
  func.func @transform_0(%arg0: i32) -> (i32, i32) {
    %c0_i32 = arith.constant 0 : i32
    %c0_i32_0 = arith.constant 0 : i32
    return %arg0, %c0_i32 : i32, i32
  }
  func.func @transform_1(%arg0: i32) -> (i32, i32) {
    %c0_i32 = arith.constant 0 : i32
    %c0_i32_0 = arith.constant 0 : i32
    return %arg0, %c0_i32 : i32, i32
  }
  func.func @transform_2(%arg0: i32) -> (i32, i32) {
    %c0_i32 = arith.constant 0 : i32
    %c0_i32_0 = arith.constant 0 : i32
    %c0_i32_1 = arith.constant 0 : i32
    return %c0_i32, %c0_i32_0 : i32, i32
  }
  func.func @transform_3(%arg0: i32) -> (i32, i32) {
    %c0_i32 = arith.constant 0 : i32
    %c0_i32_0 = arith.constant 0 : i32
    %c0_i32_1 = arith.constant 0 : i32
    return %c0_i32, %c0_i32_0 : i32, i32
  }
  func.func @transform_4(%arg0: i32) -> (i32, i32) {
    %c0_i32 = arith.constant 0 : i32
    %c0_i32_0 = arith.constant 0 : i32
    %c0_i32_1 = arith.constant 0 : i32
    return %c0_i32, %c0_i32_0 : i32, i32
  }
  func.func @transform_5(%arg0: i32) -> (i32, i32) {
    %c0_i32 = arith.constant 0 : i32
    %c0_i32_0 = arith.constant 0 : i32
    %c0_i32_1 = arith.constant 0 : i32
    return %c0_i32, %c0_i32_0 : i32, i32
  }
  func.func @transform_6(%arg0: i32) -> (i32, i32) {
    %c0_i32 = arith.constant 0 : i32
    %c0_i32_0 = arith.constant 0 : i32
    %c0_i32_1 = arith.constant 0 : i32
    return %c0_i32, %c0_i32_0 : i32, i32
  }
  func.func @transform_7(%arg0: i32) -> (i32, i32) {
    %c0_i32 = arith.constant 0 : i32
    %c0_i32_0 = arith.constant 0 : i32
    %c0_i32_1 = arith.constant 0 : i32
    return %c0_i32, %c0_i32_0 : i32, i32
  }
  func.func @transform_8(%arg0: i32) -> (i32, i32) {
    %c0_i32 = arith.constant 0 : i32
    %c0_i32_0 = arith.constant 0 : i32
    %c0_i32_1 = arith.constant 0 : i32
    return %c0_i32, %c0_i32_0 : i32, i32
  }
  func.func @transform_9(%arg0: i32) -> (i32, i32) {
    %c0_i32 = arith.constant 0 : i32
    %c0_i32_0 = arith.constant 0 : i32
    %c0_i32_1 = arith.constant 0 : i32
    return %c0_i32, %c0_i32_0 : i32, i32
  }
  func.func @transform_10(%arg0: i32) -> (i32, i32) {
    %c0_i32 = arith.constant 0 : i32
    %c0_i32_0 = arith.constant 0 : i32
    %c0_i32_1 = arith.constant 0 : i32
    return %c0_i32, %c0_i32_0 : i32, i32
  }
  func.func @transform_11(%arg0: i32) -> (i32, i32) {
    %c0_i32 = arith.constant 0 : i32
    %c0_i32_0 = arith.constant 0 : i32
    return %arg0, %c0_i32 : i32, i32
  }
}

module attributes {stable_mosaic.version = 11 : i64} {
  func.func @_norm_gru_kernel(%arg0: i32, %arg1: memref<8x32xf32, #tpu.memory_space<vmem>>, %arg2: memref<8x8xf32, #tpu.memory_space<vmem>>, %arg3: memref<1x32xf32, #tpu.memory_space<vmem>>, %arg4: memref<1x32xf32, #tpu.memory_space<vmem>>, %arg5: memref<1x32xf32, #tpu.memory_space<vmem>>, %arg6: memref<32x24xf32, #tpu.memory_space<vmem>>, %arg7: memref<8x24xf32, #tpu.memory_space<vmem>>, %arg8: memref<1x24xf32, #tpu.memory_space<vmem>>, %arg9: memref<1x24xf32, #tpu.memory_space<vmem>>, %arg10: memref<8x8xf32, #tpu.memory_space<vmem>>) attributes {dimension_semantics = [#tpu.dimension_semantics<parallel>], iteration_bounds = array<i64: 1>, scalar_prefetch = 0 : i64, scratch_operands = 0 : i64, tpu.core_type = #tpu.core_type<tc>, window_params = [{transform_indices = @transform_0, window_bounds = array<i64: 8, 32>}, {transform_indices = @transform_1, window_bounds = array<i64: 8, 8>}, {pipeline_mode = #tpu.pipeline_mode<synchronous>, transform_indices = @transform_2, window_bounds = array<i64: 1, 32>}, {pipeline_mode = #tpu.pipeline_mode<synchronous>, transform_indices = @transform_3, window_bounds = array<i64: 1, 32>}, {pipeline_mode = #tpu.pipeline_mode<synchronous>, transform_indices = @transform_4, window_bounds = array<i64: 1, 32>}, {pipeline_mode = #tpu.pipeline_mode<synchronous>, transform_indices = @transform_5, window_bounds = array<i64: 32, 24>}, {pipeline_mode = #tpu.pipeline_mode<synchronous>, transform_indices = @transform_6, window_bounds = array<i64: 8, 24>}, {pipeline_mode = #tpu.pipeline_mode<synchronous>, transform_indices = @transform_7, window_bounds = array<i64: 1, 24>}, {pipeline_mode = #tpu.pipeline_mode<synchronous>, transform_indices = @transform_8, window_bounds = array<i64: 1, 24>}, {transform_indices = @transform_9, window_bounds = array<i64: 8, 8>}]} {
    %c0 = arith.constant 0 : index
    %c0_0 = arith.constant 0 : index
    %0 = vector.load %arg1[%c0, %c0_0] : memref<8x32xf32, #tpu.memory_space<vmem>>, vector<8x32xf32>
    %c0_1 = arith.constant 0 : index
    %c0_2 = arith.constant 0 : index
    %1 = vector.load %arg3[%c0_1, %c0_2] : memref<1x32xf32, #tpu.memory_space<vmem>>, vector<1x32xf32>
    %2 = vector.broadcast %1 : vector<1x32xf32> to vector<8x32xf32>
    %3 = arith.addf %0, %2 : vector<8x32xf32>
    %cst = arith.constant dense<0.000000e+00> : vector<8xf32>
    %4 = vector.multi_reduction <add>, %3, %cst [1] : vector<8x32xf32> to vector<8xf32>
    %5 = vector.shape_cast %4 : vector<8xf32> to vector<8x1xf32>
    %cst_3 = arith.constant 3.200000e+01 : f32
    %6 = vector.broadcast %cst_3 : f32 to vector<8x1xf32>
    %7 = arith.divf %5, %6 : vector<8x1xf32>
    %8 = vector.broadcast %7 : vector<8x1xf32> to vector<8x32xf32>
    %9 = arith.subf %3, %8 : vector<8x32xf32>
    %10 = arith.mulf %9, %9 : vector<8x32xf32>
    %cst_4 = arith.constant dense<0.000000e+00> : vector<8xf32>
    %11 = vector.multi_reduction <add>, %10, %cst_4 [1] : vector<8x32xf32> to vector<8xf32>
    %12 = vector.shape_cast %11 : vector<8xf32> to vector<8x1xf32>
    %cst_5 = arith.constant 3.200000e+01 : f32
    %13 = vector.broadcast %cst_5 : f32 to vector<8x1xf32>
    %14 = arith.divf %12, %13 : vector<8x1xf32>
    %15 = vector.broadcast %7 : vector<8x1xf32> to vector<8x32xf32>
    %16 = arith.subf %3, %15 : vector<8x32xf32>
    %cst_6 = arith.constant 9.99999974E-6 : f32
    %17 = vector.broadcast %cst_6 : f32 to vector<8x1xf32>
    %18 = arith.addf %14, %17 : vector<8x1xf32>
    %19 = math.rsqrt %18 : vector<8x1xf32>
    %20 = vector.broadcast %19 : vector<8x1xf32> to vector<8x32xf32>
    %21 = arith.mulf %16, %20 : vector<8x32xf32>
    %c0_7 = arith.constant 0 : index
    %c0_8 = arith.constant 0 : index
    %22 = vector.load %arg4[%c0_7, %c0_8] : memref<1x32xf32, #tpu.memory_space<vmem>>, vector<1x32xf32>
    %23 = vector.broadcast %22 : vector<1x32xf32> to vector<8x32xf32>
    %24 = arith.mulf %21, %23 : vector<8x32xf32>
    %c0_9 = arith.constant 0 : index
    %c0_10 = arith.constant 0 : index
    %25 = vector.load %arg5[%c0_9, %c0_10] : memref<1x32xf32, #tpu.memory_space<vmem>>, vector<1x32xf32>
    %26 = vector.broadcast %25 : vector<1x32xf32> to vector<8x32xf32>
    %27 = arith.addf %24, %26 : vector<8x32xf32>
    %c0_11 = arith.constant 0 : index
    %c0_12 = arith.constant 0 : index
    %28 = vector.load %arg2[%c0_11, %c0_12] : memref<8x8xf32, #tpu.memory_space<vmem>>, vector<8x8xf32>
    %c0_13 = arith.constant 0 : index
    %c0_14 = arith.constant 0 : index
    %29 = vector.load %arg6[%c0_13, %c0_14] : memref<32x24xf32, #tpu.memory_space<vmem>>, vector<32x24xf32>
    %cst_15 = arith.constant dense<0.000000e+00> : vector<8x24xf32>
    %30 = tpu.matmul %27, %29, %cst_15 {dimension_numbers = #tpu.dot_dimension_numbers<[1], [0], [0], [1], [0, 0, 1, 1], [], []>} : vector<8x32xf32>, vector<32x24xf32>, vector<8x24xf32> -> vector<8x24xf32>
    %c0_16 = arith.constant 0 : index
    %c0_17 = arith.constant 0 : index
    %31 = vector.load %arg8[%c0_16, %c0_17] : memref<1x24xf32, #tpu.memory_space<vmem>>, vector<1x24xf32>
    %32 = vector.broadcast %31 : vector<1x24xf32> to vector<8x24xf32>
    %33 = arith.addf %30, %32 : vector<8x24xf32>
    %c0_18 = arith.constant 0 : index
    %c0_19 = arith.constant 0 : index
    %34 = vector.load %arg7[%c0_18, %c0_19] : memref<8x24xf32, #tpu.memory_space<vmem>>, vector<8x24xf32>
    %cst_20 = arith.constant dense<0.000000e+00> : vector<8x24xf32>
    %35 = tpu.matmul %28, %34, %cst_20 {dimension_numbers = #tpu.dot_dimension_numbers<[1], [0], [0], [1], [0, 0, 1, 1], [], []>} : vector<8x8xf32>, vector<8x24xf32>, vector<8x24xf32> -> vector<8x24xf32>
    %c0_21 = arith.constant 0 : index
    %c0_22 = arith.constant 0 : index
    %36 = vector.load %arg9[%c0_21, %c0_22] : memref<1x24xf32, #tpu.memory_space<vmem>>, vector<1x24xf32>
    %37 = vector.broadcast %36 : vector<1x24xf32> to vector<8x24xf32>
    %38 = arith.addf %35, %37 : vector<8x24xf32>
    %39 = vector.extract_strided_slice %33 {offsets = [0, 0], sizes = [8, 8], strides = [1, 1]} : vector<8x24xf32> to vector<8x8xf32>
    %40 = vector.extract_strided_slice %38 {offsets = [0, 0], sizes = [8, 8], strides = [1, 1]} : vector<8x24xf32> to vector<8x8xf32>
    %41 = arith.addf %39, %40 : vector<8x8xf32>
    %42 = arith.negf %41 : vector<8x8xf32>
    %43 = math.exp %42 : vector<8x8xf32>
    %cst_23 = arith.constant 1.000000e+00 : f32
    %44 = vector.broadcast %cst_23 : f32 to vector<8x8xf32>
    %45 = arith.addf %44, %43 : vector<8x8xf32>
    %46 = arith.divf %44, %45 : vector<8x8xf32>
    %47 = vector.extract_strided_slice %33 {offsets = [0, 8], sizes = [8, 8], strides = [1, 1]} : vector<8x24xf32> to vector<8x8xf32>
    %48 = vector.extract_strided_slice %38 {offsets = [0, 8], sizes = [8, 8], strides = [1, 1]} : vector<8x24xf32> to vector<8x8xf32>
    %49 = arith.addf %47, %48 : vector<8x8xf32>
    %50 = arith.negf %49 : vector<8x8xf32>
    %51 = math.exp %50 : vector<8x8xf32>
    %cst_24 = arith.constant 1.000000e+00 : f32
    %52 = vector.broadcast %cst_24 : f32 to vector<8x8xf32>
    %53 = arith.addf %52, %51 : vector<8x8xf32>
    %54 = arith.divf %52, %53 : vector<8x8xf32>
    %55 = vector.extract_strided_slice %33 {offsets = [0, 16], sizes = [8, 8], strides = [1, 1]} : vector<8x24xf32> to vector<8x8xf32>
    %56 = vector.extract_strided_slice %38 {offsets = [0, 16], sizes = [8, 8], strides = [1, 1]} : vector<8x24xf32> to vector<8x8xf32>
    %57 = arith.mulf %46, %56 : vector<8x8xf32>
    %58 = arith.addf %55, %57 : vector<8x8xf32>
    %59 = math.tanh %58 : vector<8x8xf32>
    %cst_25 = arith.constant 1.000000e+00 : f32
    %60 = vector.broadcast %cst_25 : f32 to vector<8x8xf32>
    %61 = arith.subf %60, %54 : vector<8x8xf32>
    %62 = arith.mulf %61, %59 : vector<8x8xf32>
    %63 = arith.mulf %54, %28 : vector<8x8xf32>
    %64 = arith.addf %62, %63 : vector<8x8xf32>
    %c0_26 = arith.constant 0 : index
    %c0_27 = arith.constant 0 : index
    %65 = vector.load %arg10[%c0_26, %c0_27] : memref<8x8xf32, #tpu.memory_space<vmem>>, vector<8x8xf32>
    tpu.vector_store %arg10[%c0_26, %c0_27], %64 {strides = array<i32>} : memref<8x8xf32, #tpu.memory_space<vmem>>, vector<8x8xf32>,
    return
  }
  func.func @transform_0(%arg0: i32) -> (i32, i32) {
    %c0_i32 = arith.constant 0 : i32
    %c0_i32_0 = arith.constant 0 : i32
    return %arg0, %c0_i32 : i32, i32
  }
  func.func @transform_1(%arg0: i32) -> (i32, i32) {
    %c0_i32 = arith.constant 0 : i32
    %c0_i32_0 = arith.constant 0 : i32
    return %arg0, %c0_i32 : i32, i32
  }
  func.func @transform_2(%arg0: i32) -> (i32, i32) {
    %c0_i32 = arith.constant 0 : i32
    %c0_i32_0 = arith.constant 0 : i32
    %c0_i32_1 = arith.constant 0 : i32
    return %c0_i32, %c0_i32_0 : i32, i32
  }
  func.func @transform_3(%arg0: i32) -> (i32, i32) {
    %c0_i32 = arith.constant 0 : i32
    %c0_i32_0 = arith.constant 0 : i32
    %c0_i32_1 = arith.constant 0 : i32
    return %c0_i32, %c0_i32_0 : i32, i32
  }
  func.func @transform_4(%arg0: i32) -> (i32, i32) {
    %c0_i32 = arith.constant 0 : i32
    %c0_i32_0 = arith.constant 0 : i32
    %c0_i32_1 = arith.constant 0 : i32
    return %c0_i32, %c0_i32_0 : i32, i32
  }
  func.func @transform_5(%arg0: i32) -> (i32, i32) {
    %c0_i32 = arith.constant 0 : i32
    %c0_i32_0 = arith.constant 0 : i32
    %c0_i32_1 = arith.constant 0 : i32
    return %c0_i32, %c0_i32_0 : i32, i32
  }
  func.func @transform_6(%arg0: i32) -> (i32, i32) {
    %c0_i32 = arith.constant 0 : i32
    %c0_i32_0 = arith.constant 0 : i32
    %c0_i32_1 = arith.constant 0 : i32
    return %c0_i32, %c0_i32_0 : i32, i32
  }
  func.func @transform_7(%arg0: i32) -> (i32, i32) {
    %c0_i32 = arith.constant 0 : i32
    %c0_i32_0 = arith.constant 0 : i32
    %c0_i32_1 = arith.constant 0 : i32
    return %c0_i32, %c0_i32_0 : i32, i32
  }
  func.func @transform_8(%arg0: i32) -> (i32, i32) {
    %c0_i32 = arith.constant 0 : i32
    %c0_i32_0 = arith.constant 0 : i32
    %c0_i32_1 = arith.constant 0 : i32
    return %c0_i32, %c0_i32_0 : i32, i32
  }
  func.func @transform_9(%arg0: i32) -> (i32, i32) {
    %c0_i32 = arith.constant 0 : i32
    %c0_i32_0 = arith.constant 0 : i32
    return %arg0, %c0_i32 : i32, i32
  }
}

</mosaic_0001>

<llo_original>
// kernel: sat_message_passing.4
$region0: #{sat_message_passing.4}
  #allocation0 [shape = 'u32[]', space=smem, size = 0x4, offset = 0x4, fixed_abs, tag = 'smem constant byte address 0x4 - core index']
  #allocation1 [shape = 'u32[144,128]{1,0:T(1,128)}', space=vmem, size = 0x12000, scoped, tag = 'internal scratch']
  %s0 = inlined_call_operand.vmem [shape: f32[8,16], index: 0, kind: input, shape index: {}]
  %s1 = inlined_call_operand.vmem [shape: f32[16,64], index: 1, kind: input, shape index: {}]
  %s2 = inlined_call_operand.vmem [shape: f32[1,64], index: 2, kind: input, shape index: {}]
  %s3 = inlined_call_operand.vmem [shape: f32[8,64], index: 3, kind: output, shape index: {}]
  %s4 = sld [smem:[#allocation0]]
  $region22: #{sat_message_passing.4} parent=0
    _
  %s6 = ssub.s32 1, %s4
  %s7 = scalar_select 0, %s6, %s4
  // Predicated region
  $region2: #{sat_message_passing.4} parent=0 // pred_check
    _
  $region3: #{sat_message_passing.4} parent=0 // pred_check_branch
    %9 = sbr.rel (0) target = $region5
  $region4: #{sat_message_passing.4} parent=0 // pred_region
    _
  $region5: #{sat_message_passing.4} parent=0 // pred_fallthru
    _
  // Predicated region
  $region6: #{sat_message_passing.4} parent=0 // pred_check
    _
  $region7: #{sat_message_passing.4} parent=0 // pred_check_branch
    %11 = sbr.rel (0) target = $region9
  $region8: #{sat_message_passing.4} parent=0 // pred_region
    _
  $region9: #{sat_message_passing.4} parent=0 // pred_fallthru
    _
  // Predicated region
  $region10: #{sat_message_passing.4} parent=0 // pred_check
    _
  $region11: #{sat_message_passing.4} parent=0 // pred_check_branch
    %13 = sbr.rel (0) target = $region13
  $region12: #{sat_message_passing.4} parent=0 // pred_region
    _
  $region13: #{sat_message_passing.4} parent=0 // pred_fallthru
    _
  %v14 = vld [vmem:[%s0] sm:$0xff]
  %v15 = vld [vmem:[%s1] sm:$0xff]
  %v16 = vld [vmem:[%s1 + $0x8] sm:$0xff]
  %v17 = vld [vmem:[%s2] sm:$0x1]
  %v19 = vlaneseq
  %v20 = vshrl.u32 %v19, 7
  %v21 = vsub.s32 0, %v20
  %v22 = vrot.slane %v17, %v21
  %vm24 = vcmask 130048
  %v26 = vsel %vm24, %v14, 0
  %28 = vmatprep.subr.mxu0 0.0
  %29 = vmatpush1.msra.mxu0 %v15
  %30 = vmatprep.subr.mxu0 0.0
  %31 = vmatpush1.msra.mxu0 %v16
  %32 = vmatprep.subr.mxu0 0.0
  %33 = vmatpush1.msra.mxu0 0.0
  %34 = vmatprep.subr.mxu0 0.0
  %35 = vmatpush1.msra.mxu0 0.0
  %36 = vmatprep.subr.mxu0 0.0
  %37 = vmatpush1.msra.mxu0 0.0
  %38 = vmatprep.subr.mxu0 0.0
  %39 = vmatpush1.msra.mxu0 0.0
  %40 = vmatprep.subr.mxu0 0.0
  %41 = vmatpush1.msra.mxu0 0.0
  %42 = vmatprep.subr.mxu0 0.0
  %43 = vmatpush1.msra.mxu0 0.0
  %44 = vmatprep.subr.mxu0 0.0
  %45 = vmatpush1.msra.mxu0 0.0
  %46 = vmatprep.subr.mxu0 0.0
  %47 = vmatpush1.msra.mxu0 0.0
  %48 = vmatprep.subr.mxu0 0.0
  %49 = vmatpush1.msra.mxu0 0.0
  %50 = vmatprep.subr.mxu0 0.0
  %51 = vmatpush1.msra.mxu0 0.0
  %52 = vmatprep.subr.mxu0 0.0
  %53 = vmatpush1.msra.mxu0 0.0
  %54 = vmatprep.subr.mxu0 0.0
  %55 = vmatpush1.msra.mxu0 0.0
  %56 = vmatprep.subr.mxu0 0.0
  %57 = vmatpush1.msra.mxu0 0.0
  %58 = vmatprep.subr.mxu0 0.0
  %59 = vmatpush1.msra.mxu0 0.0
  %60 = vmatprep.subr.mxu0 0.0
  %61 = vmatpush1.msra.mxu0 0.0
  %62 = vmatprep.subr.mxu0 0.0
  %63 = vmatpush1.msra.mxu0 0.0
  %64 = vmatprep.subr.mxu0 0.0
  %65 = vmatpush1.msra.mxu0 0.0
  %66 = vmatprep.subr.mxu0 0.0
  %67 = vmatpush1.msra.mxu0 0.0
  %68 = vmatprep.subr.mxu0 0.0
  %69 = vmatpush1.msra.mxu0 0.0
  %70 = vmatprep.subr.mxu0 0.0
  %71 = vmatpush1.msra.mxu0 0.0
  %72 = vmatprep.subr.mxu0 0.0
  %73 = vmatpush1.msra.mxu0 0.0
  %74 = vmatprep.subr.mxu0 0.0
  %75 = vmatpush1.msra.mxu0 0.0
  %76 = vmatprep.subr.mxu0 0.0
  %77 = vmatpush1.msra.mxu0 0.0
  %78 = vmatprep.subr.mxu0 0.0
  %79 = vmatpush1.msra.mxu0 0.0
  %80 = vmatprep.subr.mxu0 0.0
  %81 = vmatpush1.msra.mxu0 0.0
  %82 = vmatprep.subr.mxu0 0.0
  %83 = vmatpush1.msra.mxu0 0.0
  %84 = vmatprep.subr.mxu0 0.0
  %85 = vmatpush1.msra.mxu0 0.0
  %86 = vmatprep.subr.mxu0 0.0
  %87 = vmatpush1.msra.mxu0 0.0
  %88 = vmatprep.subr.mxu0 0.0
  %89 = vmatpush1.msra.mxu0 0.0
  %90 = vmatprep.subr.mxu0 0.0
  %91 = vmatpush1.msra.mxu0 0.0
  %92 = vmatprep.mubr.f32.mxu0 0.0
  %93 = vmatmul.mubr.f32.gmra.mrb[0].mxu0 %v26
  %v94 = vpop.f32.mrb[0].mxu0
  %v95 = vadd.f32 %v22, %v94
  %v96 = vpop.f32.mrb[0].mxu0
  %97 = vdwg.mxu0
  %vm98 = vcmask 523264
  %99 = vst.msk [vmem:[%s3] sm:$0xff] %vm98, %v95
  // Predicated region
  $region14: #{sat_message_passing.4} parent=0 // pred_check
    _
  $region15: #{sat_message_passing.4} parent=0 // pred_check_branch
    %101 = sbr.rel (0) target = $region17
  $region16: #{sat_message_passing.4} parent=0 // pred_region
    _
  $region17: #{sat_message_passing.4} parent=0 // pred_fallthru
    _
  // Predicated region
  $region18: #{sat_message_passing.4} parent=0 // pred_check
    _
  $region19: #{sat_message_passing.4} parent=0 // pred_check_branch
    %103 = sbr.rel (0) target = $region21
  $region20: #{sat_message_passing.4} parent=0 // pred_region
    _
  $region21: #{sat_message_passing.4} parent=0 // pred_fallthru
    _

// kernel: sat_message_passing.5
$region0: #{sat_message_passing.5}
  #allocation0 [shape = 'u32[]', space=smem, size = 0x4, offset = 0x4, fixed_abs, tag = 'smem constant byte address 0x4 - core index']
  #allocation1 [shape = 'u32[144,128]{1,0:T(1,128)}', space=vmem, size = 0x12000, scoped, tag = 'internal scratch']
  %s0 = inlined_call_operand.vmem [shape: f32[8,16], index: 0, kind: input, shape index: {}]
  %s1 = inlined_call_operand.vmem [shape: f32[16,32], index: 1, kind: input, shape index: {}]
  %s2 = inlined_call_operand.vmem [shape: f32[1,32], index: 2, kind: input, shape index: {}]
  %s3 = inlined_call_operand.vmem [shape: f32[8,32], index: 3, kind: output, shape index: {}]
  %s4 = sld [smem:[#allocation0]]
  $region22: #{sat_message_passing.5} parent=0
    _
  %s6 = ssub.s32 1, %s4
  %s7 = scalar_select 0, %s6, %s4
  // Predicated region
  $region2: #{sat_message_passing.5} parent=0 // pred_check
    _
  $region3: #{sat_message_passing.5} parent=0 // pred_check_branch
    %9 = sbr.rel (0) target = $region5
  $region4: #{sat_message_passing.5} parent=0 // pred_region
    _
  $region5: #{sat_message_passing.5} parent=0 // pred_fallthru
    _
  // Predicated region
  $region6: #{sat_message_passing.5} parent=0 // pred_check
    _
  $region7: #{sat_message_passing.5} parent=0 // pred_check_branch
    %11 = sbr.rel (0) target = $region9
  $region8: #{sat_message_passing.5} parent=0 // pred_region
    _
  $region9: #{sat_message_passing.5} parent=0 // pred_fallthru
    _
  // Predicated region
  $region10: #{sat_message_passing.5} parent=0 // pred_check
    _
  $region11: #{sat_message_passing.5} parent=0 // pred_check_branch
    %13 = sbr.rel (0) target = $region13
  $region12: #{sat_message_passing.5} parent=0 // pred_region
    _
  $region13: #{sat_message_passing.5} parent=0 // pred_fallthru
    _
  %v14 = vld [vmem:[%s0] sm:$0xff]
  %v15 = vld [vmem:[%s1] sm:$0xff]
  %v16 = vld [vmem:[%s1 + $0x8] sm:$0xff]
  %v17 = vld [vmem:[%s2] sm:$0x1]
  %v19 = vlaneseq
  %v20 = vshrl.u32 %v19, 7
  %v21 = vsub.s32 0, %v20
  %v22 = vrot.slane %v17, %v21
  %vm24 = vcmask 130048
  %v26 = vsel %vm24, %v14, 0
  %28 = vmatprep.subr.mxu0 0.0
  %29 = vmatpush1.msra.mxu0 %v15
  %30 = vmatprep.subr.mxu0 0.0
  %31 = vmatpush1.msra.mxu0 %v16
  %32 = vmatprep.subr.mxu0 0.0
  %33 = vmatpush1.msra.mxu0 0.0
  %34 = vmatprep.subr.mxu0 0.0
  %35 = vmatpush1.msra.mxu0 0.0
  %36 = vmatprep.subr.mxu0 0.0
  %37 = vmatpush1.msra.mxu0 0.0
  %38 = vmatprep.subr.mxu0 0.0
  %39 = vmatpush1.msra.mxu0 0.0
  %40 = vmatprep.subr.mxu0 0.0
  %41 = vmatpush1.msra.mxu0 0.0
  %42 = vmatprep.subr.mxu0 0.0
  %43 = vmatpush1.msra.mxu0 0.0
  %44 = vmatprep.subr.mxu0 0.0
  %45 = vmatpush1.msra.mxu0 0.0
  %46 = vmatprep.subr.mxu0 0.0
  %47 = vmatpush1.msra.mxu0 0.0
  %48 = vmatprep.subr.mxu0 0.0
  %49 = vmatpush1.msra.mxu0 0.0
  %50 = vmatprep.subr.mxu0 0.0
  %51 = vmatpush1.msra.mxu0 0.0
  %52 = vmatprep.subr.mxu0 0.0
  %53 = vmatpush1.msra.mxu0 0.0
  %54 = vmatprep.subr.mxu0 0.0
  %55 = vmatpush1.msra.mxu0 0.0
  %56 = vmatprep.subr.mxu0 0.0
  %57 = vmatpush1.msra.mxu0 0.0
  %58 = vmatprep.subr.mxu0 0.0
  %59 = vmatpush1.msra.mxu0 0.0
  %60 = vmatprep.subr.mxu0 0.0
  %61 = vmatpush1.msra.mxu0 0.0
  %62 = vmatprep.subr.mxu0 0.0
  %63 = vmatpush1.msra.mxu0 0.0
  %64 = vmatprep.subr.mxu0 0.0
  %65 = vmatpush1.msra.mxu0 0.0
  %66 = vmatprep.subr.mxu0 0.0
  %67 = vmatpush1.msra.mxu0 0.0
  %68 = vmatprep.subr.mxu0 0.0
  %69 = vmatpush1.msra.mxu0 0.0
  %70 = vmatprep.subr.mxu0 0.0
  %71 = vmatpush1.msra.mxu0 0.0
  %72 = vmatprep.subr.mxu0 0.0
  %73 = vmatpush1.msra.mxu0 0.0
  %74 = vmatprep.subr.mxu0 0.0
  %75 = vmatpush1.msra.mxu0 0.0
  %76 = vmatprep.subr.mxu0 0.0
  %77 = vmatpush1.msra.mxu0 0.0
  %78 = vmatprep.subr.mxu0 0.0
  %79 = vmatpush1.msra.mxu0 0.0
  %80 = vmatprep.subr.mxu0 0.0
  %81 = vmatpush1.msra.mxu0 0.0
  %82 = vmatprep.subr.mxu0 0.0
  %83 = vmatpush1.msra.mxu0 0.0
  %84 = vmatprep.subr.mxu0 0.0
  %85 = vmatpush1.msra.mxu0 0.0
  %86 = vmatprep.subr.mxu0 0.0
  %87 = vmatpush1.msra.mxu0 0.0
  %88 = vmatprep.subr.mxu0 0.0
  %89 = vmatpush1.msra.mxu0 0.0
  %90 = vmatprep.subr.mxu0 0.0
  %91 = vmatpush1.msra.mxu0 0.0
  %92 = vmatprep.mubr.f32.mxu0 0.0
  %93 = vmatmul.mubr.f32.gmra.mrb[0].mxu0 %v26
  %v94 = vpop.f32.mrb[0].mxu0
  %v95 = vadd.f32 %v22, %v94
  %v96 = vpop.f32.mrb[0].mxu0
  %97 = vdwg.mxu0
  %vm98 = vcmask 261120
  %99 = vst.msk [vmem:[%s3] sm:$0xff] %vm98, %v95
  // Predicated region
  $region14: #{sat_message_passing.5} parent=0 // pred_check
    _
  $region15: #{sat_message_passing.5} parent=0 // pred_check_branch
    %101 = sbr.rel (0) target = $region17
  $region16: #{sat_message_passing.5} parent=0 // pred_region
    _
  $region17: #{sat_message_passing.5} parent=0 // pred_fallthru
    _
  // Predicated region
  $region18: #{sat_message_passing.5} parent=0 // pred_check
    _
  $region19: #{sat_message_passing.5} parent=0 // pred_check_branch
    %103 = sbr.rel (0) target = $region21
  $region20: #{sat_message_passing.5} parent=0 // pred_region
    _
  $region21: #{sat_message_passing.5} parent=0 // pred_fallthru
    _

// kernel: sat_message_passing.6
$region0: #{sat_message_passing.6}
  #allocation0 [shape = 'u32[]', space=smem, size = 0x4, offset = 0x4, fixed_abs, tag = 'smem constant byte address 0x4 - core index']
  #allocation1 [shape = 'u32[144,128]{1,0:T(1,128)}', space=vmem, size = 0x12000, scoped, tag = 'internal scratch']
  %s0 = inlined_call_operand.vmem [shape: f32[8,32], index: 0, kind: input, shape index: {}]
  %s1 = inlined_call_operand.vmem [shape: f32[8,8], index: 1, kind: input, shape index: {}]
  %s2 = inlined_call_operand.vmem [shape: f32[1,32], index: 2, kind: input, shape index: {}]
  %s3 = inlined_call_operand.vmem [shape: f32[1,32], index: 3, kind: input, shape index: {}]
  %s4 = inlined_call_operand.vmem [shape: f32[1,32], index: 4, kind: input, shape index: {}]
  %s5 = inlined_call_operand.vmem [shape: f32[32,24], index: 5, kind: input, shape index: {}]
  %s6 = inlined_call_operand.vmem [shape: f32[8,24], index: 6, kind: input, shape index: {}]
  %s7 = inlined_call_operand.vmem [shape: f32[1,24], index: 7, kind: input, shape index: {}]
  %s8 = inlined_call_operand.vmem [shape: f32[1,24], index: 8, kind: input, shape index: {}]
  %s9 = inlined_call_operand.vmem [shape: f32[8,32], index: 9, kind: input, shape index: {}]
  %s10 = inlined_call_operand.vmem [shape: f32[1,32], index: 10, kind: input, shape index: {}]
  %s11 = inlined_call_operand.vmem [shape: f32[8,40], index: 11, kind: output, shape index: {}]
  %s12 = sld [smem:[#allocation0]]
  $region54: #{sat_message_passing.6} parent=0
    _
  %s14 = ssub.s32 1, %s12
  %s15 = scalar_select 0, %s14, %s12
  // Predicated region
  $region2: #{sat_message_passing.6} parent=0 // pred_check
    _
  $region3: #{sat_message_passing.6} parent=0 // pred_check_branch
    %17 = sbr.rel (0) target = $region5
  $region4: #{sat_message_passing.6} parent=0 // pred_region
    _
  $region5: #{sat_message_passing.6} parent=0 // pred_fallthru
    _
  // Predicated region
  $region6: #{sat_message_passing.6} parent=0 // pred_check
    _
  $region7: #{sat_message_passing.6} parent=0 // pred_check_branch
    %19 = sbr.rel (0) target = $region9
  $region8: #{sat_message_passing.6} parent=0 // pred_region
    _
  $region9: #{sat_message_passing.6} parent=0 // pred_fallthru
    _
  // Predicated region
  $region10: #{sat_message_passing.6} parent=0 // pred_check
    _
  $region11: #{sat_message_passing.6} parent=0 // pred_check_branch
    %21 = sbr.rel (0) target = $region13
  $region12: #{sat_message_passing.6} parent=0 // pred_region
    _
  $region13: #{sat_message_passing.6} parent=0 // pred_fallthru
    _
  // Predicated region
  $region14: #{sat_message_passing.6} parent=0 // pred_check
    _
  $region15: #{sat_message_passing.6} parent=0 // pred_check_branch
    %23 = sbr.rel (0) target = $region17
  $region16: #{sat_message_passing.6} parent=0 // pred_region
    _
  $region17: #{sat_message_passing.6} parent=0 // pred_fallthru
    _
  // Predicated region
  $region18: #{sat_message_passing.6} parent=0 // pred_check
    _
  $region19: #{sat_message_passing.6} parent=0 // pred_check_branch
    %25 = sbr.rel (0) target = $region21
  $region20: #{sat_message_passing.6} parent=0 // pred_region
    _
  $region21: #{sat_message_passing.6} parent=0 // pred_fallthru
    _
  // Predicated region
  $region22: #{sat_message_passing.6} parent=0 // pred_check
    _
  $region23: #{sat_message_passing.6} parent=0 // pred_check_branch
    %27 = sbr.rel (0) target = $region25
  $region24: #{sat_message_passing.6} parent=0 // pred_region
    _
  $region25: #{sat_message_passing.6} parent=0 // pred_fallthru
    _
  // Predicated region
  $region26: #{sat_message_passing.6} parent=0 // pred_check
    _
  $region27: #{sat_message_passing.6} parent=0 // pred_check_branch
    %29 = sbr.rel (0) target = $region29
  $region28: #{sat_message_passing.6} parent=0 // pred_region
    _
  $region29: #{sat_message_passing.6} parent=0 // pred_fallthru
    _
  // Predicated region
  $region30: #{sat_message_passing.6} parent=0 // pred_check
    _
  $region31: #{sat_message_passing.6} parent=0 // pred_check_branch
    %31 = sbr.rel (0) target = $region33
  $region32: #{sat_message_passing.6} parent=0 // pred_region
    _
  $region33: #{sat_message_passing.6} parent=0 // pred_fallthru
    _
  // Predicated region
  $region34: #{sat_message_passing.6} parent=0 // pred_check
    _
  $region35: #{sat_message_passing.6} parent=0 // pred_check_branch
    %33 = sbr.rel (0) target = $region37
  $region36: #{sat_message_passing.6} parent=0 // pred_region
    _
  $region37: #{sat_message_passing.6} parent=0 // pred_fallthru
    _
  // Predicated region
  $region38: #{sat_message_passing.6} parent=0 // pred_check
    _
  $region39: #{sat_message_passing.6} parent=0 // pred_check_branch
    %35 = sbr.rel (0) target = $region41
  $region40: #{sat_message_passing.6} parent=0 // pred_region
    _
  $region41: #{sat_message_passing.6} parent=0 // pred_fallthru
    _
  // Predicated region
  $region42: #{sat_message_passing.6} parent=0 // pred_check
    _
  $region43: #{sat_message_passing.6} parent=0 // pred_check_branch
    %37 = sbr.rel (0) target = $region45
  $region44: #{sat_message_passing.6} parent=0 // pred_region
    _
  $region45: #{sat_message_passing.6} parent=0 // pred_fallthru
    _
  %v38 = vld [vmem:[%s0] sm:$0xff]
  %v39 = vld [vmem:[%s2] sm:$0x1]
  %v41 = vlaneseq
  %v42 = vshrl.u32 %v41, 7
  %v43 = vsub.s32 0, %v42
  %v44 = vrot.slane %v39, %v43
  %v46 = vadd.f32 %v38, %v44
  %vm47 = vcmask 261120
  %v48 = vsel %vm47, %v46, 0.0
  %49 = vadd.xlane.f32.xlu0 %v48
  %v50 = vpop.xlane.xlu0 %49
  %v51 = vrcp.pop 32.0
  %v52 = vmul.f32 %v50, %v51
  %v53 = vsub.f32 %v46, %v52
  %v54 = vmul.f32 %v53, %v53
  %v55 = vsel %vm47, %v54, 0.0
  %56 = vadd.xlane.f32.xlu0 %v55
  %v57 = vpop.xlane.xlu0 %56
  %v58 = vmul.f32 %v57, %v51
  %v59 = vadd.f32 %v58, 1e-05
  %v60 = vrsqrt.pop %v59
  %v61 = vmul.f32 %v53, %v60
  %v62 = vld [vmem:[%s3] sm:$0x1]
  %v64 = vlaneseq
  %v65 = vshrl.u32 %v64, 7
  %v66 = vsub.s32 0, %v65
  %v67 = vrot.slane %v62, %v66
  %v69 = vmul.f32 %v61, %v67
  %v70 = vld [vmem:[%s4] sm:$0x1]
  %v72 = vlaneseq
  %v73 = vshrl.u32 %v72, 7
  %v74 = vsub.s32 0, %v73
  %v75 = vrot.slane %v70, %v74
  %v77 = vadd.f32 %v69, %v75
  %v78 = vld [vmem:[%s1] sm:$0xff]
  %v79 = vld [vmem:[%s5] sm:$0xff]
  %v80 = vld [vmem:[%s5 + $0x8] sm:$0xff]
  %v81 = vld [vmem:[%s5 + $0x10] sm:$0xff]
  %v82 = vld [vmem:[%s5 + $0x18] sm:$0xff]
  %v83 = vld [vmem:[%s7] sm:$0x1]
  %v85 = vlaneseq
  %v86 = vshrl.u32 %v85, 7
  %v87 = vsub.s32 0, %v86
  %v88 = vrot.slane %v83, %v87
  %v91 = vsel %vm47, %v77, 0
  %93 = vmatprep.subr.mxu0 0.0
  %94 = vmatpush1.msra.mxu0 %v79
  %95 = vmatprep.subr.mxu0 0.0
  %96 = vmatpush1.msra.mxu0 %v80
  %97 = vmatprep.subr.mxu0 0.0
  %98 = vmatpush1.msra.mxu0 %v81
  %99 = vmatprep.subr.mxu0 0.0
  %100 = vmatpush1.msra.mxu0 %v82
  %101 = vmatprep.subr.mxu0 0.0
  %102 = vmatpush1.msra.mxu0 0.0
  %103 = vmatprep.subr.mxu0 0.0
  %104 = vmatpush1.msra.mxu0 0.0
  %105 = vmatprep.subr.mxu0 0.0
  %106 = vmatpush1.msra.mxu0 0.0
  %107 = vmatprep.subr.mxu0 0.0
  %108 = vmatpush1.msra.mxu0 0.0
  %109 = vmatprep.subr.mxu0 0.0
  %110 = vmatpush1.msra.mxu0 0.0
  %111 = vmatprep.subr.mxu0 0.0
  %112 = vmatpush1.msra.mxu0 0.0
  %113 = vmatprep.subr.mxu0 0.0
  %114 = vmatpush1.msra.mxu0 0.0
  %115 = vmatprep.subr.mxu0 0.0
  %116 = vmatpush1.msra.mxu0 0.0
  %117 = vmatprep.subr.mxu0 0.0
  %118 = vmatpush1.msra.mxu0 0.0
  %119 = vmatprep.subr.mxu0 0.0
  %120 = vmatpush1.msra.mxu0 0.0
  %121 = vmatprep.subr.mxu0 0.0
  %122 = vmatpush1.msra.mxu0 0.0
  %123 = vmatprep.subr.mxu0 0.0
  %124 = vmatpush1.msra.mxu0 0.0
  %125 = vmatprep.subr.mxu0 0.0
  %126 = vmatpush1.msra.mxu0 0.0
  %127 = vmatprep.subr.mxu0 0.0
  %128 = vmatpush1.msra.mxu0 0.0
  %129 = vmatprep.subr.mxu0 0.0
  %130 = vmatpush1.msra.mxu0 0.0
  %131 = vmatprep.subr.mxu0 0.0
  %132 = vmatpush1.msra.mxu0 0.0
  %133 = vmatprep.subr.mxu0 0.0
  %134 = vmatpush1.msra.mxu0 0.0
  %135 = vmatprep.subr.mxu0 0.0
  %136 = vmatpush1.msra.mxu0 0.0
  %137 = vmatprep.subr.mxu0 0.0
  %138 = vmatpush1.msra.mxu0 0.0
  %139 = vmatprep.subr.mxu0 0.0
  %140 = vmatpush1.msra.mxu0 0.0
  %141 = vmatprep.subr.mxu0 0.0
  %142 = vmatpush1.msra.mxu0 0.0
  %143 = vmatprep.subr.mxu0 0.0
  %144 = vmatpush1.msra.mxu0 0.0
  %145 = vmatprep.subr.mxu0 0.0
  %146 = vmatpush1.msra.mxu0 0.0
  %147 = vmatprep.subr.mxu0 0.0
  %148 = vmatpush1.msra.mxu0 0.0
  %149 = vmatprep.subr.mxu0 0.0
  %150 = vmatpush1.msra.mxu0 0.0
  %151 = vmatprep.subr.mxu0 0.0
  %152 = vmatpush1.msra.mxu0 0.0
  %153 = vmatprep.subr.mxu0 0.0
  %154 = vmatpush1.msra.mxu0 0.0
  %155 = vmatprep.subr.mxu0 0.0
  %156 = vmatpush1.msra.mxu0 0.0
  %157 = vmatprep.mubr.f32.mxu0 0.0
  %158 = vmatmul.mubr.f32.gmra.mrb[0].mxu0 %v91
  %v159 = vpop.f32.mrb[0].mxu0
  %v160 = vadd.f32 %v88, %v159
  %v161 = vpop.f32.mrb[0].mxu0
  %162 = vdwg.mxu0
  %v163 = vld [vmem:[%s6] sm:$0xff]
  %v164 = vld [vmem:[%s8] sm:$0x1]
  %v166 = vlaneseq
  %v167 = vshrl.u32 %v166, 7
  %v168 = vsub.s32 0, %v167
  %v169 = vrot.slane %v164, %v168
  %vm171 = vcmask 64512
  %v173 = vsel %vm171, %v78, 0
  %175 = vmatprep.subr.mxu0 0.0
  %176 = vmatpush1.msra.mxu0 %v163
  %177 = vmatprep.subr.mxu0 0.0
  %178 = vmatpush1.msra.mxu0 0.0
  %179 = vmatprep.subr.mxu0 0.0
  %180 = vmatpush1.msra.mxu0 0.0
  %181 = vmatprep.subr.mxu0 0.0
  %182 = vmatpush1.msra.mxu0 0.0
  %183 = vmatprep.subr.mxu0 0.0
  %184 = vmatpush1.msra.mxu0 0.0
  %185 = vmatprep.subr.mxu0 0.0
  %186 = vmatpush1.msra.mxu0 0.0
  %187 = vmatprep.subr.mxu0 0.0
  %188 = vmatpush1.msra.mxu0 0.0
  %189 = vmatprep.subr.mxu0 0.0
  %190 = vmatpush1.msra.mxu0 0.0
  %191 = vmatprep.subr.mxu0 0.0
  %192 = vmatpush1.msra.mxu0 0.0
  %193 = vmatprep.subr.mxu0 0.0
  %194 = vmatpush1.msra.mxu0 0.0
  %195 = vmatprep.subr.mxu0 0.0
  %196 = vmatpush1.msra.mxu0 0.0
  %197 = vmatprep.subr.mxu0 0.0
  %198 = vmatpush1.msra.mxu0 0.0
  %199 = vmatprep.subr.mxu0 0.0
  %200 = vmatpush1.msra.mxu0 0.0
  %201 = vmatprep.subr.mxu0 0.0
  %202 = vmatpush1.msra.mxu0 0.0
  %203 = vmatprep.subr.mxu0 0.0
  %204 = vmatpush1.msra.mxu0 0.0
  %205 = vmatprep.subr.mxu0 0.0
  %206 = vmatpush1.msra.mxu0 0.0
  %207 = vmatprep.subr.mxu0 0.0
  %208 = vmatpush1.msra.mxu0 0.0
  %209 = vmatprep.subr.mxu0 0.0
  %210 = vmatpush1.msra.mxu0 0.0
  %211 = vmatprep.subr.mxu0 0.0
  %212 = vmatpush1.msra.mxu0 0.0
  %213 = vmatprep.subr.mxu0 0.0
  %214 = vmatpush1.msra.mxu0 0.0
  %215 = vmatprep.subr.mxu0 0.0
  %216 = vmatpush1.msra.mxu0 0.0
  %217 = vmatprep.subr.mxu0 0.0
  %218 = vmatpush1.msra.mxu0 0.0
  %219 = vmatprep.subr.mxu0 0.0
  %220 = vmatpush1.msra.mxu0 0.0
  %221 = vmatprep.subr.mxu0 0.0
  %222 = vmatpush1.msra.mxu0 0.0
  %223 = vmatprep.subr.mxu0 0.0
  %224 = vmatpush1.msra.mxu0 0.0
  %225 = vmatprep.subr.mxu0 0.0
  %226 = vmatpush1.msra.mxu0 0.0
  %227 = vmatprep.subr.mxu0 0.0
  %228 = vmatpush1.msra.mxu0 0.0
  %229 = vmatprep.subr.mxu0 0.0
  %230 = vmatpush1.msra.mxu0 0.0
  %231 = vmatprep.subr.mxu0 0.0
  %232 = vmatpush1.msra.mxu0 0.0
  %233 = vmatprep.subr.mxu0 0.0
  %234 = vmatpush1.msra.mxu0 0.0
  %235 = vmatprep.subr.mxu0 0.0
  %236 = vmatpush1.msra.mxu0 0.0
  %237 = vmatprep.subr.mxu0 0.0
  %238 = vmatpush1.msra.mxu0 0.0
  %239 = vmatprep.mubr.f32.mxu0 0.0
  %240 = vmatmul.mubr.f32.gmra.mrb[0].mxu0 %v173
  %v241 = vpop.f32.mrb[0].mxu0
  %v242 = vadd.f32 %v169, %v241
  %v243 = vpop.f32.mrb[0].mxu0
  %244 = vdwg.mxu0
  %v245 = vadd.f32 %v160, %v242
  %v246 = vxor.u32 %v245, 2147483648
  %v247 = vmul.f32 %v246, 1.442695
  %v248 = vpow.pop %v247
  %v249 = vadd.f32 %v248, 1.0
  %v250 = vrcp.pop %v249
  %v251 = vmul.f32 1.0, %v250
  %253 = vrot.lane.b32.xlu0 %v242, 112
  %v254 = vpop.permute.xlu0 %253
  %v256 = vmul.f32 %v251, %v254
  %258 = vrot.lane.b32.xlu0 %v256, 16
  %v259 = vpop.permute.xlu0 %258
  %v261 = vadd.f32 %v160, %v259
  %v262 = vtanh.pop %v261
  %v263 = vsub.f32 1.0, %v251
  %265 = vrot.lane.b32.xlu0 %v262, 120
  %v266 = vpop.permute.xlu0 %265
  %v268 = vmul.f32 %v263, %v266
  %269 = vrot.lane.b32.xlu0 %v78, 8
  %v270 = vpop.permute.xlu0 %269
  %v272 = vmul.f32 %v251, %v270
  %v273 = vadd.f32 %v268, %v272
  %v274 = vld [vmem:[%s9] sm:$0xff]
  %v275 = vld [vmem:[%s10] sm:$0x1]
  %v277 = vlaneseq
  %v278 = vshrl.u32 %v277, 7
  %v279 = vsub.s32 0, %v278
  %v280 = vrot.slane %v275, %v279
  %283 = vrot.lane.b32.xlu0 %v273, 120
  %v284 = vpop.permute.xlu0 %283
  %v285 = vsel %vm171, %v284, 0
  %287 = vmatprep.subr.mxu0 0.0
  %288 = vmatpush1.msra.mxu0 %v274
  %289 = vmatprep.subr.mxu0 0.0
  %290 = vmatpush1.msra.mxu0 0.0
  %291 = vmatprep.subr.mxu0 0.0
  %292 = vmatpush1.msra.mxu0 0.0
  %293 = vmatprep.subr.mxu0 0.0
  %294 = vmatpush1.msra.mxu0 0.0
  %295 = vmatprep.subr.mxu0 0.0
  %296 = vmatpush1.msra.mxu0 0.0
  %297 = vmatprep.subr.mxu0 0.0
  %298 = vmatpush1.msra.mxu0 0.0
  %299 = vmatprep.subr.mxu0 0.0
  %300 = vmatpush1.msra.mxu0 0.0
  %301 = vmatprep.subr.mxu0 0.0
  %302 = vmatpush1.msra.mxu0 0.0
  %303 = vmatprep.subr.mxu0 0.0
  %304 = vmatpush1.msra.mxu0 0.0
  %305 = vmatprep.subr.mxu0 0.0
  %306 = vmatpush1.msra.mxu0 0.0
  %307 = vmatprep.subr.mxu0 0.0
  %308 = vmatpush1.msra.mxu0 0.0
  %309 = vmatprep.subr.mxu0 0.0
  %310 = vmatpush1.msra.mxu0 0.0
  %311 = vmatprep.subr.mxu0 0.0
  %312 = vmatpush1.msra.mxu0 0.0
  %313 = vmatprep.subr.mxu0 0.0
  %314 = vmatpush1.msra.mxu0 0.0
  %315 = vmatprep.subr.mxu0 0.0
  %316 = vmatpush1.msra.mxu0 0.0
  %317 = vmatprep.subr.mxu0 0.0
  %318 = vmatpush1.msra.mxu0 0.0
  %319 = vmatprep.subr.mxu0 0.0
  %320 = vmatpush1.msra.mxu0 0.0
  %321 = vmatprep.subr.mxu0 0.0
  %322 = vmatpush1.msra.mxu0 0.0
  %323 = vmatprep.subr.mxu0 0.0
  %324 = vmatpush1.msra.mxu0 0.0
  %325 = vmatprep.subr.mxu0 0.0
  %326 = vmatpush1.msra.mxu0 0.0
  %327 = vmatprep.subr.mxu0 0.0
  %328 = vmatpush1.msra.mxu0 0.0
  %329 = vmatprep.subr.mxu0 0.0
  %330 = vmatpush1.msra.mxu0 0.0
  %331 = vmatprep.subr.mxu0 0.0
  %332 = vmatpush1.msra.mxu0 0.0
  %333 = vmatprep.subr.mxu0 0.0
  %334 = vmatpush1.msra.mxu0 0.0
  %335 = vmatprep.subr.mxu0 0.0
  %336 = vmatpush1.msra.mxu0 0.0
  %337 = vmatprep.subr.mxu0 0.0
  %338 = vmatpush1.msra.mxu0 0.0
  %339 = vmatprep.subr.mxu0 0.0
  %340 = vmatpush1.msra.mxu0 0.0
  %341 = vmatprep.subr.mxu0 0.0
  %342 = vmatpush1.msra.mxu0 0.0
  %343 = vmatprep.subr.mxu0 0.0
  %344 = vmatpush1.msra.mxu0 0.0
  %345 = vmatprep.subr.mxu0 0.0
  %346 = vmatpush1.msra.mxu0 0.0
  %347 = vmatprep.subr.mxu0 0.0
  %348 = vmatpush1.msra.mxu0 0.0
  %349 = vmatprep.subr.mxu0 0.0
  %350 = vmatpush1.msra.mxu0 0.0
  %351 = vmatprep.mubr.f32.mxu0 0.0
  %352 = vmatmul.mubr.f32.gmra.mrb[0].mxu0 %v285
  %v353 = vpop.f32.mrb[0].mxu0
  %v354 = vadd.f32 %v280, %v353
  %v355 = vpop.f32.mrb[0].mxu0
  %356 = vdwg.mxu0
  %359 = vrot.lane.b32.xlu0 %v354, 8
  %v360 = vpop.permute.xlu0 %359
  %v362 = vsel %vm171, %v284, %v360
  %vm363 = vcmask 326656
  %364 = vst.msk [vmem:[%s11] sm:$0xff] %vm363, %v362
  // Predicated region
  $region46: #{sat_message_passing.6} parent=0 // pred_check
    _
  $region47: #{sat_message_passing.6} parent=0 // pred_check_branch
    %366 = sbr.rel (0) target = $region49
  $region48: #{sat_message_passing.6} parent=0 // pred_region
    _
  $region49: #{sat_message_passing.6} parent=0 // pred_fallthru
    _
  // Predicated region
  $region50: #{sat_message_passing.6} parent=0 // pred_check
    _
  $region51: #{sat_message_passing.6} parent=0 // pred_check_branch
    %368 = sbr.rel (0) target = $region53
  $region52: #{sat_message_passing.6} parent=0 // pred_region
    _
  $region53: #{sat_message_passing.6} parent=0 // pred_fallthru
    _

// kernel: sat_message_passing.7
$region0: #{sat_message_passing.7}
  #allocation0 [shape = 'u32[]', space=smem, size = 0x4, offset = 0x4, fixed_abs, tag = 'smem constant byte address 0x4 - core index']
  #allocation1 [shape = 'u32[144,128]{1,0:T(1,128)}', space=vmem, size = 0x12000, scoped, tag = 'internal scratch']
  %s0 = inlined_call_operand.vmem [shape: f32[8,32], index: 0, kind: input, shape index: {}]
  %s1 = inlined_call_operand.vmem [shape: f32[8,8], index: 1, kind: input, shape index: {}]
  %s2 = inlined_call_operand.vmem [shape: f32[1,32], index: 2, kind: input, shape index: {}]
  %s3 = inlined_call_operand.vmem [shape: f32[1,32], index: 3, kind: input, shape index: {}]
  %s4 = inlined_call_operand.vmem [shape: f32[1,32], index: 4, kind: input, shape index: {}]
  %s5 = inlined_call_operand.vmem [shape: f32[32,24], index: 5, kind: input, shape index: {}]
  %s6 = inlined_call_operand.vmem [shape: f32[8,24], index: 6, kind: input, shape index: {}]
  %s7 = inlined_call_operand.vmem [shape: f32[1,24], index: 7, kind: input, shape index: {}]
  %s8 = inlined_call_operand.vmem [shape: f32[1,24], index: 8, kind: input, shape index: {}]
  %s9 = inlined_call_operand.vmem [shape: f32[8,8], index: 9, kind: output, shape index: {}]
  %s10 = sld [smem:[#allocation0]]
  $region46: #{sat_message_passing.7} parent=0
    _
  %s12 = ssub.s32 1, %s10
  %s13 = scalar_select 0, %s12, %s10
  // Predicated region
  $region2: #{sat_message_passing.7} parent=0 // pred_check
    _
  $region3: #{sat_message_passing.7} parent=0 // pred_check_branch
    %15 = sbr.rel (0) target = $region5
  $region4: #{sat_message_passing.7} parent=0 // pred_region
    _
  $region5: #{sat_message_passing.7} parent=0 // pred_fallthru
    _
  // Predicated region
  $region6: #{sat_message_passing.7} parent=0 // pred_check
    _
  $region7: #{sat_message_passing.7} parent=0 // pred_check_branch
    %17 = sbr.rel (0) target = $region9
  $region8: #{sat_message_passing.7} parent=0 // pred_region
    _
  $region9: #{sat_message_passing.7} parent=0 // pred_fallthru
    _
  // Predicated region
  $region10: #{sat_message_passing.7} parent=0 // pred_check
    _
  $region11: #{sat_message_passing.7} parent=0 // pred_check_branch
    %19 = sbr.rel (0) target = $region13
  $region12: #{sat_message_passing.7} parent=0 // pred_region
    _
  $region13: #{sat_message_passing.7} parent=0 // pred_fallthru
    _
  // Predicated region
  $region14: #{sat_message_passing.7} parent=0 // pred_check
    _
  $region15: #{sat_message_passing.7} parent=0 // pred_check_branch
    %21 = sbr.rel (0) target = $region17
  $region16: #{sat_message_passing.7} parent=0 // pred_region
    _
  $region17: #{sat_message_passing.7} parent=0 // pred_fallthru
    _
  // Predicated region
  $region18: #{sat_message_passing.7} parent=0 // pred_check
    _
  $region19: #{sat_message_passing.7} parent=0 // pred_check_branch
    %23 = sbr.rel (0) target = $region21
  $region20: #{sat_message_passing.7} parent=0 // pred_region
    _
  $region21: #{sat_message_passing.7} parent=0 // pred_fallthru
    _
  // Predicated region
  $region22: #{sat_message_passing.7} parent=0 // pred_check
    _
  $region23: #{sat_message_passing.7} parent=0 // pred_check_branch
    %25 = sbr.rel (0) target = $region25
  $region24: #{sat_message_passing.7} parent=0 // pred_region
    _
  $region25: #{sat_message_passing.7} parent=0 // pred_fallthru
    _
  // Predicated region
  $region26: #{sat_message_passing.7} parent=0 // pred_check
    _
  $region27: #{sat_message_passing.7} parent=0 // pred_check_branch
    %27 = sbr.rel (0) target = $region29
  $region28: #{sat_message_passing.7} parent=0 // pred_region
    _
  $region29: #{sat_message_passing.7} parent=0 // pred_fallthru
    _
  // Predicated region
  $region30: #{sat_message_passing.7} parent=0 // pred_check
    _
  $region31: #{sat_message_passing.7} parent=0 // pred_check_branch
    %29 = sbr.rel (0) target = $region33
  $region32: #{sat_message_passing.7} parent=0 // pred_region
    _
  $region33: #{sat_message_passing.7} parent=0 // pred_fallthru
    _
  // Predicated region
  $region34: #{sat_message_passing.7} parent=0 // pred_check
    _
  $region35: #{sat_message_passing.7} parent=0 // pred_check_branch
    %31 = sbr.rel (0) target = $region37
  $region36: #{sat_message_passing.7} parent=0 // pred_region
    _
  $region37: #{sat_message_passing.7} parent=0 // pred_fallthru
    _
  %v32 = vld [vmem:[%s0] sm:$0xff]
  %v33 = vld [vmem:[%s2] sm:$0x1]
  %v35 = vlaneseq
  %v36 = vshrl.u32 %v35, 7
  %v37 = vsub.s32 0, %v36
  %v38 = vrot.slane %v33, %v37
  %v40 = vadd.f32 %v32, %v38
  %vm41 = vcmask 261120
  %v42 = vsel %vm41, %v40, 0.0
  %43 = vadd.xlane.f32.xlu0 %v42
  %v44 = vpop.xlane.xlu0 %43
  %v45 = vrcp.pop 32.0
  %v46 = vmul.f32 %v44, %v45
  %v47 = vsub.f32 %v40, %v46
  %v48 = vmul.f32 %v47, %v47
  %v49 = vsel %vm41, %v48, 0.0
  %50 = vadd.xlane.f32.xlu0 %v49
  %v51 = vpop.xlane.xlu0 %50
  %v52 = vmul.f32 %v51, %v45
  %v53 = vadd.f32 %v52, 1e-05
  %v54 = vrsqrt.pop %v53
  %v55 = vmul.f32 %v47, %v54
  %v56 = vld [vmem:[%s3] sm:$0x1]
  %v58 = vlaneseq
  %v59 = vshrl.u32 %v58, 7
  %v60 = vsub.s32 0, %v59
  %v61 = vrot.slane %v56, %v60
  %v63 = vmul.f32 %v55, %v61
  %v64 = vld [vmem:[%s4] sm:$0x1]
  %v66 = vlaneseq
  %v67 = vshrl.u32 %v66, 7
  %v68 = vsub.s32 0, %v67
  %v69 = vrot.slane %v64, %v68
  %v71 = vadd.f32 %v63, %v69
  %v72 = vld [vmem:[%s1] sm:$0xff]
  %v73 = vld [vmem:[%s5] sm:$0xff]
  %v74 = vld [vmem:[%s5 + $0x8] sm:$0xff]
  %v75 = vld [vmem:[%s5 + $0x10] sm:$0xff]
  %v76 = vld [vmem:[%s5 + $0x18] sm:$0xff]
  %v77 = vld [vmem:[%s7] sm:$0x1]
  %v79 = vlaneseq
  %v80 = vshrl.u32 %v79, 7
  %v81 = vsub.s32 0, %v80
  %v82 = vrot.slane %v77, %v81
  %v85 = vsel %vm41, %v71, 0
  %87 = vmatprep.subr.mxu0 0.0
  %88 = vmatpush1.msra.mxu0 %v73
  %89 = vmatprep.subr.mxu0 0.0
  %90 = vmatpush1.msra.mxu0 %v74
  %91 = vmatprep.subr.mxu0 0.0
  %92 = vmatpush1.msra.mxu0 %v75
  %93 = vmatprep.subr.mxu0 0.0
  %94 = vmatpush1.msra.mxu0 %v76
  %95 = vmatprep.subr.mxu0 0.0
  %96 = vmatpush1.msra.mxu0 0.0
  %97 = vmatprep.subr.mxu0 0.0
  %98 = vmatpush1.msra.mxu0 0.0
  %99 = vmatprep.subr.mxu0 0.0
  %100 = vmatpush1.msra.mxu0 0.0
  %101 = vmatprep.subr.mxu0 0.0
  %102 = vmatpush1.msra.mxu0 0.0
  %103 = vmatprep.subr.mxu0 0.0
  %104 = vmatpush1.msra.mxu0 0.0
  %105 = vmatprep.subr.mxu0 0.0
  %106 = vmatpush1.msra.mxu0 0.0
  %107 = vmatprep.subr.mxu0 0.0
  %108 = vmatpush1.msra.mxu0 0.0
  %109 = vmatprep.subr.mxu0 0.0
  %110 = vmatpush1.msra.mxu0 0.0
  %111 = vmatprep.subr.mxu0 0.0
  %112 = vmatpush1.msra.mxu0 0.0
  %113 = vmatprep.subr.mxu0 0.0
  %114 = vmatpush1.msra.mxu0 0.0
  %115 = vmatprep.subr.mxu0 0.0
  %116 = vmatpush1.msra.mxu0 0.0
  %117 = vmatprep.subr.mxu0 0.0
  %118 = vmatpush1.msra.mxu0 0.0
  %119 = vmatprep.subr.mxu0 0.0
  %120 = vmatpush1.msra.mxu0 0.0
  %121 = vmatprep.subr.mxu0 0.0
  %122 = vmatpush1.msra.mxu0 0.0
  %123 = vmatprep.subr.mxu0 0.0
  %124 = vmatpush1.msra.mxu0 0.0
  %125 = vmatprep.subr.mxu0 0.0
  %126 = vmatpush1.msra.mxu0 0.0
  %127 = vmatprep.subr.mxu0 0.0
  %128 = vmatpush1.msra.mxu0 0.0
  %129 = vmatprep.subr.mxu0 0.0
  %130 = vmatpush1.msra.mxu0 0.0
  %131 = vmatprep.subr.mxu0 0.0
  %132 = vmatpush1.msra.mxu0 0.0
  %133 = vmatprep.subr.mxu0 0.0
  %134 = vmatpush1.msra.mxu0 0.0
  %135 = vmatprep.subr.mxu0 0.0
  %136 = vmatpush1.msra.mxu0 0.0
  %137 = vmatprep.subr.mxu0 0.0
  %138 = vmatpush1.msra.mxu0 0.0
  %139 = vmatprep.subr.mxu0 0.0
  %140 = vmatpush1.msra.mxu0 0.0
  %141 = vmatprep.subr.mxu0 0.0
  %142 = vmatpush1.msra.mxu0 0.0
  %143 = vmatprep.subr.mxu0 0.0
  %144 = vmatpush1.msra.mxu0 0.0
  %145 = vmatprep.subr.mxu0 0.0
  %146 = vmatpush1.msra.mxu0 0.0
  %147 = vmatprep.subr.mxu0 0.0
  %148 = vmatpush1.msra.mxu0 0.0
  %149 = vmatprep.subr.mxu0 0.0
  %150 = vmatpush1.msra.mxu0 0.0
  %151 = vmatprep.mubr.f32.mxu0 0.0
  %152 = vmatmul.mubr.f32.gmra.mrb[0].mxu0 %v85
  %v153 = vpop.f32.mrb[0].mxu0
  %v154 = vadd.f32 %v82, %v153
  %v155 = vpop.f32.mrb[0].mxu0
  %156 = vdwg.mxu0
  %v157 = vld [vmem:[%s6] sm:$0xff]
  %v158 = vld [vmem:[%s8] sm:$0x1]
  %v160 = vlaneseq
  %v161 = vshrl.u32 %v160, 7
  %v162 = vsub.s32 0, %v161
  %v163 = vrot.slane %v158, %v162
  %vm165 = vcmask 64512
  %v167 = vsel %vm165, %v72, 0
  %169 = vmatprep.subr.mxu0 0.0
  %170 = vmatpush1.msra.mxu0 %v157
  %171 = vmatprep.subr.mxu0 0.0
  %172 = vmatpush1.msra.mxu0 0.0
  %173 = vmatprep.subr.mxu0 0.0
  %174 = vmatpush1.msra.mxu0 0.0
  %175 = vmatprep.subr.mxu0 0.0
  %176 = vmatpush1.msra.mxu0 0.0
  %177 = vmatprep.subr.mxu0 0.0
  %178 = vmatpush1.msra.mxu0 0.0
  %179 = vmatprep.subr.mxu0 0.0
  %180 = vmatpush1.msra.mxu0 0.0
  %181 = vmatprep.subr.mxu0 0.0
  %182 = vmatpush1.msra.mxu0 0.0
  %183 = vmatprep.subr.mxu0 0.0
  %184 = vmatpush1.msra.mxu0 0.0
  %185 = vmatprep.subr.mxu0 0.0
  %186 = vmatpush1.msra.mxu0 0.0
  %187 = vmatprep.subr.mxu0 0.0
  %188 = vmatpush1.msra.mxu0 0.0
  %189 = vmatprep.subr.mxu0 0.0
  %190 = vmatpush1.msra.mxu0 0.0
  %191 = vmatprep.subr.mxu0 0.0
  %192 = vmatpush1.msra.mxu0 0.0
  %193 = vmatprep.subr.mxu0 0.0
  %194 = vmatpush1.msra.mxu0 0.0
  %195 = vmatprep.subr.mxu0 0.0
  %196 = vmatpush1.msra.mxu0 0.0
  %197 = vmatprep.subr.mxu0 0.0
  %198 = vmatpush1.msra.mxu0 0.0
  %199 = vmatprep.subr.mxu0 0.0
  %200 = vmatpush1.msra.mxu0 0.0
  %201 = vmatprep.subr.mxu0 0.0
  %202 = vmatpush1.msra.mxu0 0.0
  %203 = vmatprep.subr.mxu0 0.0
  %204 = vmatpush1.msra.mxu0 0.0
  %205 = vmatprep.subr.mxu0 0.0
  %206 = vmatpush1.msra.mxu0 0.0
  %207 = vmatprep.subr.mxu0 0.0
  %208 = vmatpush1.msra.mxu0 0.0
  %209 = vmatprep.subr.mxu0 0.0
  %210 = vmatpush1.msra.mxu0 0.0
  %211 = vmatprep.subr.mxu0 0.0
  %212 = vmatpush1.msra.mxu0 0.0
  %213 = vmatprep.subr.mxu0 0.0
  %214 = vmatpush1.msra.mxu0 0.0
  %215 = vmatprep.subr.mxu0 0.0
  %216 = vmatpush1.msra.mxu0 0.0
  %217 = vmatprep.subr.mxu0 0.0
  %218 = vmatpush1.msra.mxu0 0.0
  %219 = vmatprep.subr.mxu0 0.0
  %220 = vmatpush1.msra.mxu0 0.0
  %221 = vmatprep.subr.mxu0 0.0
  %222 = vmatpush1.msra.mxu0 0.0
  %223 = vmatprep.subr.mxu0 0.0
  %224 = vmatpush1.msra.mxu0 0.0
  %225 = vmatprep.subr.mxu0 0.0
  %226 = vmatpush1.msra.mxu0 0.0
  %227 = vmatprep.subr.mxu0 0.0
  %228 = vmatpush1.msra.mxu0 0.0
  %229 = vmatprep.subr.mxu0 0.0
  %230 = vmatpush1.msra.mxu0 0.0
  %231 = vmatprep.subr.mxu0 0.0
  %232 = vmatpush1.msra.mxu0 0.0
  %233 = vmatprep.mubr.f32.mxu0 0.0
  %234 = vmatmul.mubr.f32.gmra.mrb[0].mxu0 %v167
  %v235 = vpop.f32.mrb[0].mxu0
  %v236 = vadd.f32 %v163, %v235
  %v237 = vpop.f32.mrb[0].mxu0
  %238 = vdwg.mxu0
  %v239 = vadd.f32 %v154, %v236
  %v240 = vxor.u32 %v239, 2147483648
  %v241 = vmul.f32 %v240, 1.442695
  %v242 = vpow.pop %v241
  %v243 = vadd.f32 %v242, 1.0
  %v244 = vrcp.pop %v243
  %v245 = vmul.f32 1.0, %v244
  %247 = vrot.lane.b32.xlu0 %v236, 112
  %v248 = vpop.permute.xlu0 %247
  %v250 = vmul.f32 %v245, %v248
  %252 = vrot.lane.b32.xlu0 %v250, 16
  %v253 = vpop.permute.xlu0 %252
  %v255 = vadd.f32 %v154, %v253
  %v256 = vtanh.pop %v255
  %v257 = vsub.f32 1.0, %v245
  %259 = vrot.lane.b32.xlu0 %v256, 120
  %v260 = vpop.permute.xlu0 %259
  %v262 = vmul.f32 %v257, %v260
  %263 = vrot.lane.b32.xlu0 %v72, 8
  %v264 = vpop.permute.xlu0 %263
  %v266 = vmul.f32 %v245, %v264
  %v267 = vadd.f32 %v262, %v266
  %269 = vrot.lane.b32.xlu0 %v267, 120
  %v270 = vpop.permute.xlu0 %269
  %272 = vst.msk [vmem:[%s9] sm:$0xff] %vm165, %v270
  // Predicated region
  $region38: #{sat_message_passing.7} parent=0 // pred_check
    _
  $region39: #{sat_message_passing.7} parent=0 // pred_check_branch
    %274 = sbr.rel (0) target = $region41
  $region40: #{sat_message_passing.7} parent=0 // pred_region
    _
  $region41: #{sat_message_passing.7} parent=0 // pred_fallthru
    _
  // Predicated region
  $region42: #{sat_message_passing.7} parent=0 // pred_check
    _
  $region43: #{sat_message_passing.7} parent=0 // pred_check_branch
    %276 = sbr.rel (0) target = $region45
  $region44: #{sat_message_passing.7} parent=0 // pred_region
    _
  $region45: #{sat_message_passing.7} parent=0 // pred_fallthru
    _

</llo_original>
